<compile_context>
chip_gen: v7x
topology: tpu7x:2x2x1
jax: 0.10.0
libtpu: 0.0.40
codegen_flags: <defaults>
</compile_context>

<pallas_src>
import functools

import jax
import jax.numpy as jnp
from jax import lax
from jax.experimental import pallas as pl
from jax.experimental.pallas import tpu as pltpu

TQ = 128          # query tile (lane-dense output dim)
TK = 128          # key/value tile
TN = 128          # spatial tile for the projection pass
NEG_INF = -1e30   # finite "-inf" (avoids inf-inf NaNs when masking padded keys)


def _round_up(x, m):
    return ((x + m - 1) // m) * m


# --------------------------------------------------------------------------
# Stage 1: Q/K/V projections (1x1 convs == channel matmuls), computed once per
# (batch, spatial tile) so the attention inner loop never recomputes them.
# --------------------------------------------------------------------------
def _proj_kernel(x_ref, wq_ref, bq_ref, wk_ref, bk_ref, wv_ref, bv_ref,
                 q_ref, k_ref, v_ref):
    x = x_ref[...]                                                    # (C, TN) f32
    q = jnp.dot(wq_ref[...], x, preferred_element_type=jnp.float32) + bq_ref[...]
    k = jnp.dot(wk_ref[...], x, preferred_element_type=jnp.float32) + bk_ref[...]
    v = jnp.dot(wv_ref[...], x, preferred_element_type=jnp.float32) + bv_ref[...]
    q_ref[...] = q.astype(q_ref.dtype)
    k_ref[...] = k.astype(k_ref.dtype)
    v_ref[...] = v.astype(v_ref.dtype)


# --------------------------------------------------------------------------
# Stage 2: flash attention with online softmax and deferred normalization.
# --------------------------------------------------------------------------
def _flash_attn_kernel(q_ref, k_ref, v_ref, o_ref, m_ref, l_ref, acc_ref,
                       *, tk, n_valid, mask_needed):
    ki = pl.program_id(2)

    @pl.when(ki == 0)
    def _():
        m_ref[...] = jnp.full_like(m_ref, NEG_INF)
        l_ref[...] = jnp.zeros_like(l_ref)
        acc_ref[...] = jnp.zeros_like(acc_ref)

    q = q_ref[...]                       # (Cq_pad, TQ) bf16
    k = k_ref[...]                       # (Cq_pad, TK) bf16

    # s[kv, q] = sum_c K[c, kv] * Q[c, q]   (contraction over channels, no
    # explicit transpose; keeping kv on the sublane axis makes the softmax
    # reductions cheap and all broadcasts layout-aligned)
    s = lax.dot_general(k, q, (((0,), (0,)), ((), ())),
                        preferred_element_type=jnp.float32)           # (TK, TQ)

    if mask_needed:                      # static: only when N was padded to 128
        kv_idx = ki * tk + lax.broadcasted_iota(jnp.int32, s.shape, 0)
        s = jnp.where(kv_idx < n_valid, s, NEG_INF)

    m_prev = m_ref[...]                                              # (1, TQ)
    m_new = jnp.maximum(m_prev, jnp.max(s, axis=0, keepdims=True))   # (1, TQ)
    alpha = jnp.exp(m_prev - m_new)                                  # (1, TQ)
    p = jnp.exp(s - m_new)                                           # (TK, TQ) f32

    l_ref[...] = alpha * l_ref[...] + jnp.sum(p, axis=0, keepdims=True)
    m_ref[...] = m_new

    # acc[c, q] += sum_kv V[c, kv] * p[kv, q]   (bf16 MXU operands, f32 accum)
    pv = lax.dot_general(v_ref[...], p.astype(v_ref.dtype),
                         (((1,), (0,)), ((), ())),
                         preferred_element_type=jnp.float32)          # (C, TQ)
    acc_ref[...] = alpha * acc_ref[...] + pv

    @pl.when(ki == pl.num_programs(2) - 1)
    def _():
        # Deferred softmax normalization: one (C, TQ) scale instead of an
        # O(N^2) normalization of the attention matrix.  gamma is already
        # folded into the value weights.
        inv_l = pl.reciprocal(l_ref[...], approx=True)                # (1, TQ)
        o_ref[...] = (acc_ref[...] * inv_l).astype(o_ref.dtype)


def self_attn_pallas(x, params):
    """x: (B, C, W, H) float32.  Returns (B, C, W, H) float32."""
    B, C, W, H = x.shape
    N = W * H
    N_pad = _round_up(N, max(TQ, TK))
    Cq = params["wq"].shape[0]
    Cq_pad = _round_up(Cq, 128)          # MXU-native contraction width

    gamma = params["gamma"].reshape(()).astype(jnp.float32)

    # Zero-pad the tiny query/key channel dim to 128 (padded rows are zero, so
    # they contribute nothing to the energy dot product).
    wq = jnp.pad(params["wq"], ((0, Cq_pad - Cq), (0, 0)))
    bq = jnp.pad(params["bq"], (0, Cq_pad - Cq)).reshape(Cq_pad, 1)
    wk = jnp.pad(params["wk"], ((0, Cq_pad - Cq), (0, 0)))
    bk = jnp.pad(params["bk"], (0, Cq_pad - Cq)).reshape(Cq_pad, 1)
    # Fold gamma into the value projection: gamma*(V @ A^T) == ((gamma*V) @ A^T).
    wv = params["wv"] * gamma
    bv = (params["bv"] * gamma).reshape(C, 1)

    x_flat = x.reshape(B, C, N)
    if N_pad != N:
        x_flat = jnp.pad(x_flat, ((0, 0), (0, 0), (0, N_pad - N)))

    # ---- Stage 1: projections ------------------------------------------------
    n_sp = N_pad // TN
    proj_cost = pl.CostEstimate(
        flops=2 * B * N_pad * C * (2 * Cq_pad + C),
        transcendentals=0,
        bytes_accessed=B * N_pad * (C * 4 + (2 * Cq_pad + C) * 2))

    q, k, v = pl.pallas_call(
        _proj_kernel,
        out_shape=(
            jax.ShapeDtypeStruct((B, Cq_pad, N_pad), jnp.bfloat16),
            jax.ShapeDtypeStruct((B, Cq_pad, N_pad), jnp.bfloat16),
            jax.ShapeDtypeStruct((B, C, N_pad), jnp.bfloat16),
        ),
        grid_spec=pltpu.PrefetchScalarGridSpec(
            num_scalar_prefetch=0,
            grid=(B, n_sp),
            in_specs=[
                pl.BlockSpec((None, C, TN), lambda b, n: (b, 0, n)),   # x
                pl.BlockSpec((Cq_pad, C), lambda b, n: (0, 0)),        # wq
                pl.BlockSpec((Cq_pad, 1), lambda b, n: (0, 0)),        # bq
                pl.BlockSpec((Cq_pad, C), lambda b, n: (0, 0)),        # wk
                pl.BlockSpec((Cq_pad, 1), lambda b, n: (0, 0)),        # bk
                pl.BlockSpec((C, C), lambda b, n: (0, 0)),             # wv (gamma folded)
                pl.BlockSpec((C, 1), lambda b, n: (0, 0)),             # bv (gamma folded)
            ],
            out_specs=[
                pl.BlockSpec((None, Cq_pad, TN), lambda b, n: (b, 0, n)),
                pl.BlockSpec((None, Cq_pad, TN), lambda b, n: (b, 0, n)),
                pl.BlockSpec((None, C, TN), lambda b, n: (b, 0, n)),
            ]),
        compiler_params=pltpu.CompilerParams(
            dimension_semantics=("parallel", "parallel"),
            vmem_limit_bytes=32 * 1024 * 1024),
        cost_estimate=proj_cost,
    )(x_flat, wq, bq, wk, bk, wv, bv)

    # ---- Stage 2: flash attention --------------------------------------------
    n_q = N_pad // TQ
    n_kv = N_pad // TK
    attn_cost = pl.CostEstimate(
        flops=2 * B * N_pad * N_pad * (Cq_pad + C),
        transcendentals=B * N_pad * N_pad,
        bytes_accessed=B * (n_q * (Cq_pad + C) * N_pad * 2
                            + Cq_pad * N_pad * 2 + C * N_pad * 4))

    kernel = functools.partial(_flash_attn_kernel, tk=TK, n_valid=N,
                               mask_needed=(N_pad != N))

    out_flat = pl.pallas_call(
        kernel,
        out_shape=jax.ShapeDtypeStruct((B, C, N_pad), jnp.float32),
        grid_spec=pltpu.PrefetchScalarGridSpec(
            num_scalar_prefetch=0,
            grid=(B, n_q, n_kv),
            in_specs=[
                pl.BlockSpec((None, Cq_pad, TQ), lambda b, qi, ki: (b, 0, qi)),  # Q
                pl.BlockSpec((None, Cq_pad, TK), lambda b, qi, ki: (b, 0, ki)),  # K
                pl.BlockSpec((None, C, TK), lambda b, qi, ki: (b, 0, ki)),       # V
            ],
            out_specs=pl.BlockSpec((None, C, TQ), lambda b, qi, ki: (b, 0, qi)),
            scratch_shapes=[
                pltpu.VMEM((1, TQ), jnp.float32),    # running max  m
                pltpu.VMEM((1, TQ), jnp.float32),    # running sum  l
                pltpu.VMEM((C, TQ), jnp.float32),    # output accumulator
            ]),
        compiler_params=pltpu.CompilerParams(
            dimension_semantics=("parallel", "parallel", "arbitrary"),
            vmem_limit_bytes=32 * 1024 * 1024),
        cost_estimate=attn_cost,
    )(q, k, v)

    return out_flat[:, :, :N].reshape(B, C, W, H)


# --------------------------------------------------------------------------
# Parameter init + pure-JAX reference (mirrors the PyTorch forward()).
# --------------------------------------------------------------------------
def init_params(key, C):
    """Deterministic synthetic parameters matching nn.Conv2d(..., kernel_size=1)."""
    Cq = C // 8
    ks = jax.random.split(key, 6)
    scale = 0.1
    return {
        "wq": scale * jax.random.normal(ks[0], (Cq, C), jnp.float32),
        "bq": scale * jax.random.normal(ks[1], (Cq,), jnp.float32),
        "wk": scale * jax.random.normal(ks[2], (Cq, C), jnp.float32),
        "bk": scale * jax.random.normal(ks[3], (Cq,), jnp.float32),
        "wv": scale * jax.random.normal(ks[4], (C, C), jnp.float32),
        "bv": scale * jax.random.normal(ks[5], (C,), jnp.float32),
        "gamma": jnp.ones((1,), jnp.float32),   # torch.ones(1)
    }


def self_attn_reference(x, p):
    """Pure-JAX reference mirroring the PyTorch forward() (no '+ x' residual)."""
    B, C, W, H = x.shape
    N = W * H
    xf = x.reshape(B, C, N)
    q = jnp.einsum("oc,bcn->bon", p["wq"], xf) + p["bq"][None, :, None]
    k = jnp.einsum("oc,bcn->bon", p["wk"], xf) + p["bk"][None, :, None]
    v = jnp.einsum("oc,bcn->bon", p["wv"], xf) + p["bv"][None, :, None]
    energy = jnp.einsum("bcn,bcm->bnm", q, k)           # (B, N, N)
    attn = jax.nn.softmax(energy, axis=-1)
    out = jnp.einsum("bcn,bmn->bcm", v, attn)           # v @ attn^T
    return (p["gamma"][0] * out).reshape(B, C, W, H)


if __name__ == "__main__":
    key = jax.random.PRNGKey(0)
    k_x, k_p = jax.random.split(key)

    # Small but tiling-exercising shapes: N = 16*16 = 256 -> 2 query tiles and
    # 2 KV tiles per batch, so the online-softmax accumulate path runs.
    B, C, W, H = 2, 16, 16, 16
    x = jax.random.normal(k_x, (B, C, W, H), jnp.float32)
    params = init_params(k_p, C)

    out = self_attn_pallas(x, params)
    out = jax.block_until_ready(out)

    ref = self_attn_reference(x, params)
    assert out.shape == (B, C, W, H)
    # bf16 MXU operands (Q/K/V and softmax probs) with f32 accumulation.
    assert jnp.allclose(out, ref, atol=2e-2, rtol=2e-2), "mismatch vs reference"

    print("KERNEL_OK")
</pallas_src>

<mosaic_0001>
module attributes {stable_mosaic.version = 11 : i64} {
  func.func @_proj_kernel(%arg0: i32, %arg1: i32, %arg2: memref<1x16x128xf32, #tpu.memory_space<vmem>>, %arg3: memref<128x16xf32, #tpu.memory_space<vmem>>, %arg4: memref<128x1xf32, #tpu.memory_space<vmem>>, %arg5: memref<128x16xf32, #tpu.memory_space<vmem>>, %arg6: memref<128x1xf32, #tpu.memory_space<vmem>>, %arg7: memref<16x16xf32, #tpu.memory_space<vmem>>, %arg8: memref<16x1xf32, #tpu.memory_space<vmem>>, %arg9: memref<1x128x128xbf16, #tpu.memory_space<vmem>>, %arg10: memref<1x128x128xbf16, #tpu.memory_space<vmem>>, %arg11: memref<1x16x128xbf16, #tpu.memory_space<vmem>>) attributes {dimension_semantics = [#tpu.dimension_semantics<parallel>, #tpu.dimension_semantics<parallel>], iteration_bounds = array<i64: 2, 2>, scalar_prefetch = 0 : i64, scratch_operands = 0 : i64, tpu.core_type = #tpu.core_type<tc>, window_params = [{transform_indices = @transform_0, window_bounds = array<i64: 1, 16, 128>}, {pipeline_mode = #tpu.pipeline_mode<synchronous>, transform_indices = @transform_1, window_bounds = array<i64: 128, 16>}, {pipeline_mode = #tpu.pipeline_mode<synchronous>, transform_indices = @transform_2, window_bounds = array<i64: 128, 1>}, {pipeline_mode = #tpu.pipeline_mode<synchronous>, transform_indices = @transform_3, window_bounds = array<i64: 128, 16>}, {pipeline_mode = #tpu.pipeline_mode<synchronous>, transform_indices = @transform_4, window_bounds = array<i64: 128, 1>}, {pipeline_mode = #tpu.pipeline_mode<synchronous>, transform_indices = @transform_5, window_bounds = array<i64: 16, 16>}, {pipeline_mode = #tpu.pipeline_mode<synchronous>, transform_indices = @transform_6, window_bounds = array<i64: 16, 1>}, {transform_indices = @transform_7, window_bounds = array<i64: 1, 128, 128>}, {transform_indices = @transform_8, window_bounds = array<i64: 1, 128, 128>}, {transform_indices = @transform_9, window_bounds = array<i64: 1, 16, 128>}]} {
    %c0 = arith.constant 0 : index
    %c0_0 = arith.constant 0 : index
    %c0_1 = arith.constant 0 : index
    %0 = vector.load %arg2[%c0, %c0_0, %c0_1] : memref<1x16x128xf32, #tpu.memory_space<vmem>>, vector<1x16x128xf32>
    %1 = vector.shape_cast %0 : vector<1x16x128xf32> to vector<16x128xf32>
    %c0_2 = arith.constant 0 : index
    %c0_3 = arith.constant 0 : index
    %2 = vector.load %arg3[%c0_2, %c0_3] : memref<128x16xf32, #tpu.memory_space<vmem>>, vector<128x16xf32>
    %cst = arith.constant dense<0.000000e+00> : vector<128x128xf32>
    %3 = tpu.matmul %2, %1, %cst {dimension_numbers = #tpu.dot_dimension_numbers<[1], [0], [0], [1], [0, 0, 1, 1], [], []>} : vector<128x16xf32>, vector<16x128xf32>, vector<128x128xf32> -> vector<128x128xf32>
    %c0_4 = arith.constant 0 : index
    %c0_5 = arith.constant 0 : index
    %4 = vector.load %arg4[%c0_4, %c0_5] : memref<128x1xf32, #tpu.memory_space<vmem>>, vector<128x1xf32>
    %5 = vector.broadcast %4 : vector<128x1xf32> to vector<128x128xf32>
    %6 = arith.addf %3, %5 : vector<128x128xf32>
    %c0_6 = arith.constant 0 : index
    %c0_7 = arith.constant 0 : index
    %7 = vector.load %arg5[%c0_6, %c0_7] : memref<128x16xf32, #tpu.memory_space<vmem>>, vector<128x16xf32>
    %cst_8 = arith.constant dense<0.000000e+00> : vector<128x128xf32>
    %8 = tpu.matmul %7, %1, %cst_8 {dimension_numbers = #tpu.dot_dimension_numbers<[1], [0], [0], [1], [0, 0, 1, 1], [], []>} : vector<128x16xf32>, vector<16x128xf32>, vector<128x128xf32> -> vector<128x128xf32>
    %c0_9 = arith.constant 0 : index
    %c0_10 = arith.constant 0 : index
    %9 = vector.load %arg6[%c0_9, %c0_10] : memref<128x1xf32, #tpu.memory_space<vmem>>, vector<128x1xf32>
    %10 = vector.broadcast %9 : vector<128x1xf32> to vector<128x128xf32>
    %11 = arith.addf %8, %10 : vector<128x128xf32>
    %c0_11 = arith.constant 0 : index
    %c0_12 = arith.constant 0 : index
    %12 = vector.load %arg7[%c0_11, %c0_12] : memref<16x16xf32, #tpu.memory_space<vmem>>, vector<16x16xf32>
    %cst_13 = arith.constant dense<0.000000e+00> : vector<16x128xf32>
    %13 = tpu.matmul %12, %1, %cst_13 {dimension_numbers = #tpu.dot_dimension_numbers<[1], [0], [0], [1], [0, 0, 1, 1], [], []>} : vector<16x16xf32>, vector<16x128xf32>, vector<16x128xf32> -> vector<16x128xf32>
    %c0_14 = arith.constant 0 : index
    %c0_15 = arith.constant 0 : index
    %14 = vector.load %arg8[%c0_14, %c0_15] : memref<16x1xf32, #tpu.memory_space<vmem>>, vector<16x1xf32>
    %15 = vector.broadcast %14 : vector<16x1xf32> to vector<16x128xf32>
    %16 = arith.addf %13, %15 : vector<16x128xf32>
    %17 = arith.truncf %6 : vector<128x128xf32> to vector<128x128xbf16>
    %c0_16 = arith.constant 0 : index
    %c0_17 = arith.constant 0 : index
    %c0_18 = arith.constant 0 : index
    %18 = vector.load %arg9[%c0_16, %c0_17, %c0_18] : memref<1x128x128xbf16, #tpu.memory_space<vmem>>, vector<1x128x128xbf16>
    %19 = vector.shape_cast %18 : vector<1x128x128xbf16> to vector<128x128xbf16>
    %20 = vector.shape_cast %17 : vector<128x128xbf16> to vector<1x128x128xbf16>
    tpu.vector_store %arg9[%c0_16, %c0_17, %c0_18], %20 {strides = array<i32>} : memref<1x128x128xbf16, #tpu.memory_space<vmem>>, vector<1x128x128xbf16>,
    %21 = arith.truncf %11 : vector<128x128xf32> to vector<128x128xbf16>
    %c0_19 = arith.constant 0 : index
    %c0_20 = arith.constant 0 : index
    %c0_21 = arith.constant 0 : index
    %22 = vector.load %arg10[%c0_19, %c0_20, %c0_21] : memref<1x128x128xbf16, #tpu.memory_space<vmem>>, vector<1x128x128xbf16>
    %23 = vector.shape_cast %22 : vector<1x128x128xbf16> to vector<128x128xbf16>
    %24 = vector.shape_cast %21 : vector<128x128xbf16> to vector<1x128x128xbf16>
    tpu.vector_store %arg10[%c0_19, %c0_20, %c0_21], %24 {strides = array<i32>} : memref<1x128x128xbf16, #tpu.memory_space<vmem>>, vector<1x128x128xbf16>,
    %25 = arith.truncf %16 : vector<16x128xf32> to vector<16x128xbf16>
    %c0_22 = arith.constant 0 : index
    %c0_23 = arith.constant 0 : index
    %c0_24 = arith.constant 0 : index
    %26 = vector.load %arg11[%c0_22, %c0_23, %c0_24] : memref<1x16x128xbf16, #tpu.memory_space<vmem>>, vector<1x16x128xbf16>
    %27 = vector.shape_cast %26 : vector<1x16x128xbf16> to vector<16x128xbf16>
    %28 = vector.shape_cast %25 : vector<16x128xbf16> to vector<1x16x128xbf16>
    tpu.vector_store %arg11[%c0_22, %c0_23, %c0_24], %28 {strides = array<i32>} : memref<1x16x128xbf16, #tpu.memory_space<vmem>>, vector<1x16x128xbf16>,
    return
  }
  func.func @transform_0(%arg0: i32, %arg1: i32) -> (i32, i32, i32) {
    %c0_i32 = arith.constant 0 : i32
    %c0_i32_0 = arith.constant 0 : i32
    return %arg0, %c0_i32, %arg1 : i32, i32, i32
  }
  func.func @transform_1(%arg0: i32, %arg1: i32) -> (i32, i32) {
    %c0_i32 = arith.constant 0 : i32
    %c0_i32_0 = arith.constant 0 : i32
    %c0_i32_1 = arith.constant 0 : i32
    return %c0_i32, %c0_i32_0 : i32, i32
  }
  func.func @transform_2(%arg0: i32, %arg1: i32) -> (i32, i32) {
    %c0_i32 = arith.constant 0 : i32
    %c0_i32_0 = arith.constant 0 : i32
    %c0_i32_1 = arith.constant 0 : i32
    return %c0_i32, %c0_i32_0 : i32, i32
  }
  func.func @transform_3(%arg0: i32, %arg1: i32) -> (i32, i32) {
    %c0_i32 = arith.constant 0 : i32
    %c0_i32_0 = arith.constant 0 : i32
    %c0_i32_1 = arith.constant 0 : i32
    return %c0_i32, %c0_i32_0 : i32, i32
  }
  func.func @transform_4(%arg0: i32, %arg1: i32) -> (i32, i32) {
    %c0_i32 = arith.constant 0 : i32
    %c0_i32_0 = arith.constant 0 : i32
    %c0_i32_1 = arith.constant 0 : i32
    return %c0_i32, %c0_i32_0 : i32, i32
  }
  func.func @transform_5(%arg0: i32, %arg1: i32) -> (i32, i32) {
    %c0_i32 = arith.constant 0 : i32
    %c0_i32_0 = arith.constant 0 : i32
    %c0_i32_1 = arith.constant 0 : i32
    return %c0_i32, %c0_i32_0 : i32, i32
  }
  func.func @transform_6(%arg0: i32, %arg1: i32) -> (i32, i32) {
    %c0_i32 = arith.constant 0 : i32
    %c0_i32_0 = arith.constant 0 : i32
    %c0_i32_1 = arith.constant 0 : i32
    return %c0_i32, %c0_i32_0 : i32, i32
  }
  func.func @transform_7(%arg0: i32, %arg1: i32) -> (i32, i32, i32) {
    %c0_i32 = arith.constant 0 : i32
    %c0_i32_0 = arith.constant 0 : i32
    return %arg0, %c0_i32, %arg1 : i32, i32, i32
  }
  func.func @transform_8(%arg0: i32, %arg1: i32) -> (i32, i32, i32) {
    %c0_i32 = arith.constant 0 : i32
    %c0_i32_0 = arith.constant 0 : i32
    return %arg0, %c0_i32, %arg1 : i32, i32, i32
  }
  func.func @transform_9(%arg0: i32, %arg1: i32) -> (i32, i32, i32) {
    %c0_i32 = arith.constant 0 : i32
    %c0_i32_0 = arith.constant 0 : i32
    return %arg0, %c0_i32, %arg1 : i32, i32, i32
  }
}

</mosaic_0001>

<llo_original>
// kernel: tpu_custom_call.1
$region0: #{tpu_custom_call.1}
  #allocation0 [shape = 'u32[]', space=smem, size = 0x4, offset = 0x4, fixed_abs, tag = 'smem constant byte address 0x4 - core index']
  #allocation1 [shape = 'u32[144,128]{1,0:T(1,128)}', space=vmem, size = 0x12000, scoped, tag = 'internal scratch']
  %s0 = inlined_call_operand.vmem [shape: f32[2,16,256], index: 0, kind: input, shape index: {}]
  %s1 = inlined_call_operand.vmem [shape: f32[128,16], index: 1, kind: input, shape index: {}]
  %s2 = inlined_call_operand.vmem [shape: f32[128,1], index: 2, kind: input, shape index: {}]
  %s3 = inlined_call_operand.vmem [shape: f32[128,16], index: 3, kind: input, shape index: {}]
  %s4 = inlined_call_operand.vmem [shape: f32[128,1], index: 4, kind: input, shape index: {}]
  %s5 = inlined_call_operand.vmem [shape: f32[16,16], index: 5, kind: input, shape index: {}]
  %s6 = inlined_call_operand.vmem [shape: f32[16,1], index: 6, kind: input, shape index: {}]
  %s7 = inlined_call_operand.hbm [shape: bf16[2,128,256], index: 7, kind: output, shape index: {0}]
  %s8 = inlined_call_operand.hbm [shape: bf16[2,128,256], index: 8, kind: output, shape index: {1}]
  %s9 = inlined_call_operand.hbm [shape: bf16[2,16,256], index: 9, kind: output, shape index: {2}]
  %10 = xla_tuple %s7, %s8, %s9
  %s11 = sld [smem:[#allocation0]]
  $region115: #{tpu_custom_call.1} parent=0
    _
  %s13 = ssub.s32 1, %s11
  %s14 = scalar_select 0, %s13, %s11
  $region1: #{tpu_custom_call.1} parent=0
    #allocation2 [shape = 'u8[16384]{0}', space=vmem, size = 0x4000, scoped, tag = 'input window, operand 0']
    #allocation3 [shape = 'u8[65536]{0}', space=vmem, size = 0x10000, scoped, tag = 'output window, operand 0']
    #allocation4 [shape = 's32[2]{0}', space=sflag, size = 0x8, scoped, tag = 'scoped memory for tpu_custom_call.1']
    #allocation5 [shape = 'u8[65536]{0}', space=vmem, size = 0x10000, scoped, tag = 'output window, operand 1']
    #allocation6 [shape = 's32[2]{0}', space=sflag, size = 0x8, scoped, tag = 'scoped memory for tpu_custom_call.1']
    #allocation7 [shape = 'u8[8192]{0}', space=vmem, size = 0x2000, scoped, tag = 'output window, operand 2']
    %15 = vsyncpa [#allocation4], 0
    %s16 = scalar_lea.sflag [#allocation4], 1
    %17 = vsyncpa %s16, 0
    %18 = vsyncpa [#allocation6], 0
    %s19 = scalar_lea.sflag [#allocation6], 1
    %20 = vsyncpa %s19, 0
    loop: start=0, step=1, limit=6
    $region2: #{tpu_custom_call.1} parent=1 // loop_pre_header
      _
    $region3: #{tpu_custom_call.1} parent=1 // loop_header
      %s22 = sphi 0, %s26
      %p23 = scmp.ge.s32.totalorder %s22, 6
      %s29 = sphi 0, %s41
      %s30 = sphi 0, %s37
      %s31 = sphi 0, %s29
      %s32 = sphi 0, %s30
      %s33 = sphi 0, %s31
      %s34 = sphi 0, %s32
      %s46 = sphi 0, %s48
      %s49 = sphi 0, %s46
      %s50 = sphi 0, %s49
      %s66 = sphi 0, %s50
      %s70 = sphi 0, %s70
      %s72 = sphi 0, %s70
      %s73 = sphi 0, %s72
      %s87 = sphi 0, %s73
      %s91 = sphi 0, %s91
      %s93 = sphi 0, %s91
      %s94 = sphi 0, %s93
      %s108 = sphi 0, %s94
      %s112 = sphi 0, %s112
      %s114 = sphi 0, %s112
      %s115 = sphi 0, %s114
      %s129 = sphi 0, %s115
      %s133 = sphi 0, %s133
      %s135 = sphi 0, %s133
      %s136 = sphi 0, %s135
      %s150 = sphi 0, %s136
      %s154 = sphi 0, %s154
      %s156 = sphi 0, %s154
      %s157 = sphi 0, %s156
      %s171 = sphi 0, %s157
      %s175 = sphi 0, %s175
      %s177 = sphi 0, %s175
      %s178 = sphi 0, %s177
      %s192 = sphi 0, %s178
      %s200 = sphi 0, %s202
      %s203 = sphi 0, %s200
      %s204 = sphi 0, %s203
      %s220 = sphi 0, %s204
      %s228 = sphi 0, %s230
      %s231 = sphi 0, %s228
      %s232 = sphi 0, %s231
      %s248 = sphi 0, %s232
      %s256 = sphi 0, %s258
      %s259 = sphi 0, %s256
      %s260 = sphi 0, %s259
      %s276 = sphi 0, %s260
    $region4: #{tpu_custom_call.1} parent=1 // loop_header_branch
      %25 = sbr.rel (%p23) target = $region8
    $region5: #{tpu_custom_call.1} parent=1 // loop_body
      %s27 = ssub.s32 %s22, 1
      %s28 = ssub.s32 %s22, 2
      %s35 = sadd.s32 1, %s30
      %p36 = scmp.ge.s32.totalorder %s35, 2
      %s37 = scalar_select %p36, 0, %s35
      %s38 = sadd.s32 1, %s29
      %s39 = scalar_select %p36, %s38, %s29
      %p40 = scmp.ge.s32.totalorder %s39, 2
      %s41 = scalar_select %p40, 0, %s39
      %s42 = ssub.s32 %s29, %s41
      %s43 = ssub.s32 %s30, %s37
      %s44 = sor.u32 %s42, %s43
      %p45 = scmp.eq.s32.totalorder %s44, 0
      %s47 = sadd.s32 %s46, 1
      %s48 = scalar_select %p45, %s46, %s47
      %p51 = pneg %p45
      %p52 = scmp.eq.s32.totalorder %s22, 3
      %p53 = por %p51, %p52
      %p54 = scmp.ne.s32.totalorder %s46, %s49
      %p55 = scmp.eq.s32.totalorder %s22, 0
      %p56 = por %p54, %p55
      %p57 = scmp.ne.s32.totalorder %s46, %s49
      %p58 = scmp.eq.s32.totalorder %s27, 3
      %p59 = por %p57, %p58
      %p60 = scmp.ne.s32.totalorder %s49, %s50
      %p61 = scmp.eq.s32.totalorder %s27, 0
      %p62 = por %p60, %p61
      %p63 = scmp.ne.s32.totalorder %s49, %s50
      %p64 = scmp.eq.s32.totalorder %s28, 3
      %p65 = por %p63, %p64
      %p67 = scmp.ne.s32.totalorder %s50, %s66
      %p68 = scmp.eq.s32.totalorder %s28, 0
      %p69 = por %p67, %p68
      %s71 = sadd.s32 %s70, 1
      %p74 = scmp.eq.s32.totalorder %s22, 3
      %p75 = scmp.ne.s32.totalorder %s70, %s72
      %p76 = scmp.eq.s32.totalorder %s22, 0
      %p77 = por %p75, %p76
      %p78 = scmp.ne.s32.totalorder %s70, %s72
      %p79 = scmp.eq.s32.totalorder %s27, 3
      %p80 = por %p78, %p79
      %p81 = scmp.ne.s32.totalorder %s72, %s73
      %p82 = scmp.eq.s32.totalorder %s27, 0
      %p83 = por %p81, %p82
      %p84 = scmp.ne.s32.totalorder %s72, %s73
      %p85 = scmp.eq.s32.totalorder %s28, 3
      %p86 = por %p84, %p85
      %p88 = scmp.ne.s32.totalorder %s73, %s87
      %p89 = scmp.eq.s32.totalorder %s28, 0
      %p90 = por %p88, %p89
      %s92 = sadd.s32 %s91, 1
      %p95 = scmp.eq.s32.totalorder %s22, 3
      %p96 = scmp.ne.s32.totalorder %s91, %s93
      %p97 = scmp.eq.s32.totalorder %s22, 0
      %p98 = por %p96, %p97
      %p99 = scmp.ne.s32.totalorder %s91, %s93
      %p100 = scmp.eq.s32.totalorder %s27, 3
      %p101 = por %p99, %p100
      %p102 = scmp.ne.s32.totalorder %s93, %s94
      %p103 = scmp.eq.s32.totalorder %s27, 0
      %p104 = por %p102, %p103
      %p105 = scmp.ne.s32.totalorder %s93, %s94
      %p106 = scmp.eq.s32.totalorder %s28, 3
      %p107 = por %p105, %p106
      %p109 = scmp.ne.s32.totalorder %s94, %s108
      %p110 = scmp.eq.s32.totalorder %s28, 0
      %p111 = por %p109, %p110
      %s113 = sadd.s32 %s112, 1
      %p116 = scmp.eq.s32.totalorder %s22, 3
      %p117 = scmp.ne.s32.totalorder %s112, %s114
      %p118 = scmp.eq.s32.totalorder %s22, 0
      %p119 = por %p117, %p118
      %p120 = scmp.ne.s32.totalorder %s112, %s114
      %p121 = scmp.eq.s32.totalorder %s27, 3
      %p122 = por %p120, %p121
      %p123 = scmp.ne.s32.totalorder %s114, %s115
      %p124 = scmp.eq.s32.totalorder %s27, 0
      %p125 = por %p123, %p124
      %p126 = scmp.ne.s32.totalorder %s114, %s115
      %p127 = scmp.eq.s32.totalorder %s28, 3
      %p128 = por %p126, %p127
      %p130 = scmp.ne.s32.totalorder %s115, %s129
      %p131 = scmp.eq.s32.totalorder %s28, 0
      %p132 = por %p130, %p131
      %s134 = sadd.s32 %s133, 1
      %p137 = scmp.eq.s32.totalorder %s22, 3
      %p138 = scmp.ne.s32.totalorder %s133, %s135
      %p139 = scmp.eq.s32.totalorder %s22, 0
      %p140 = por %p138, %p139
      %p141 = scmp.ne.s32.totalorder %s133, %s135
      %p142 = scmp.eq.s32.totalorder %s27, 3
      %p143 = por %p141, %p142
      %p144 = scmp.ne.s32.totalorder %s135, %s136
      %p145 = scmp.eq.s32.totalorder %s27, 0
      %p146 = por %p144, %p145
      %p147 = scmp.ne.s32.totalorder %s135, %s136
      %p148 = scmp.eq.s32.totalorder %s28, 3
      %p149 = por %p147, %p148
      %p151 = scmp.ne.s32.totalorder %s136, %s150
      %p152 = scmp.eq.s32.totalorder %s28, 0
      %p153 = por %p151, %p152
      %s155 = sadd.s32 %s154, 1
      %p158 = scmp.eq.s32.totalorder %s22, 3
      %p159 = scmp.ne.s32.totalorder %s154, %s156
      %p160 = scmp.eq.s32.totalorder %s22, 0
      %p161 = por %p159, %p160
      %p162 = scmp.ne.s32.totalorder %s154, %s156
      %p163 = scmp.eq.s32.totalorder %s27, 3
      %p164 = por %p162, %p163
      %p165 = scmp.ne.s32.totalorder %s156, %s157
      %p166 = scmp.eq.s32.totalorder %s27, 0
      %p167 = por %p165, %p166
      %p168 = scmp.ne.s32.totalorder %s156, %s157
      %p169 = scmp.eq.s32.totalorder %s28, 3
      %p170 = por %p168, %p169
      %p172 = scmp.ne.s32.totalorder %s157, %s171
      %p173 = scmp.eq.s32.totalorder %s28, 0
      %p174 = por %p172, %p173
      %s176 = sadd.s32 %s175, 1
      %p179 = scmp.eq.s32.totalorder %s22, 3
      %p180 = scmp.ne.s32.totalorder %s175, %s177
      %p181 = scmp.eq.s32.totalorder %s22, 0
      %p182 = por %p180, %p181
      %p183 = scmp.ne.s32.totalorder %s175, %s177
      %p184 = scmp.eq.s32.totalorder %s27, 3
      %p185 = por %p183, %p184
      %p186 = scmp.ne.s32.totalorder %s177, %s178
      %p187 = scmp.eq.s32.totalorder %s27, 0
      %p188 = por %p186, %p187
      %p189 = scmp.ne.s32.totalorder %s177, %s178
      %p190 = scmp.eq.s32.totalorder %s28, 3
      %p191 = por %p189, %p190
      %p193 = scmp.ne.s32.totalorder %s178, %s192
      %p194 = scmp.eq.s32.totalorder %s28, 0
      %p195 = por %p193, %p194
      %s196 = ssub.s32 %s29, %s41
      %s197 = ssub.s32 %s30, %s37
      %s198 = sor.u32 %s196, %s197
      %p199 = scmp.eq.s32.totalorder %s198, 0
      %s201 = sadd.s32 %s200, 1
      %s202 = scalar_select %p199, %s200, %s201
      %p205 = pneg %p199
      %p206 = scmp.eq.s32.totalorder %s22, 3
      %p207 = por %p205, %p206
      %p208 = scmp.ne.s32.totalorder %s200, %s203
      %p209 = scmp.eq.s32.totalorder %s22, 0
      %p210 = por %p208, %p209
      %p211 = scmp.ne.s32.totalorder %s200, %s203
      %p212 = scmp.eq.s32.totalorder %s27, 3
      %p213 = por %p211, %p212
      %p214 = scmp.ne.s32.totalorder %s203, %s204
      %p215 = scmp.eq.s32.totalorder %s27, 0
      %p216 = por %p214, %p215
      %p217 = scmp.ne.s32.totalorder %s203, %s204
      %p218 = scmp.eq.s32.totalorder %s28, 3
      %p219 = por %p217, %p218
      %p221 = scmp.ne.s32.totalorder %s204, %s220
      %p222 = scmp.eq.s32.totalorder %s28, 0
      %p223 = por %p221, %p222
      %s224 = ssub.s32 %s29, %s41
      %s225 = ssub.s32 %s30, %s37
      %s226 = sor.u32 %s224, %s225
      %p227 = scmp.eq.s32.totalorder %s226, 0
      %s229 = sadd.s32 %s228, 1
      %s230 = scalar_select %p227, %s228, %s229
      %p233 = pneg %p227
      %p234 = scmp.eq.s32.totalorder %s22, 3
      %p235 = por %p233, %p234
      %p236 = scmp.ne.s32.totalorder %s228, %s231
      %p237 = scmp.eq.s32.totalorder %s22, 0
      %p238 = por %p236, %p237
      %p239 = scmp.ne.s32.totalorder %s228, %s231
      %p240 = scmp.eq.s32.totalorder %s27, 3
      %p241 = por %p239, %p240
      %p242 = scmp.ne.s32.totalorder %s231, %s232
      %p243 = scmp.eq.s32.totalorder %s27, 0
      %p244 = por %p242, %p243
      %p245 = scmp.ne.s32.totalorder %s231, %s232
      %p246 = scmp.eq.s32.totalorder %s28, 3
      %p247 = por %p245, %p246
      %p249 = scmp.ne.s32.totalorder %s232, %s248
      %p250 = scmp.eq.s32.totalorder %s28, 0
      %p251 = por %p249, %p250
      %s252 = ssub.s32 %s29, %s41
      %s253 = ssub.s32 %s30, %s37
      %s254 = sor.u32 %s252, %s253
      %p255 = scmp.eq.s32.totalorder %s254, 0
      %s257 = sadd.s32 %s256, 1
      %s258 = scalar_select %p255, %s256, %s257
      %p261 = pneg %p255
      %p262 = scmp.eq.s32.totalorder %s22, 3
      %p263 = por %p261, %p262
      %p264 = scmp.ne.s32.totalorder %s256, %s259
      %p265 = scmp.eq.s32.totalorder %s22, 0
      %p266 = por %p264, %p265
      %p267 = scmp.ne.s32.totalorder %s256, %s259
      %p268 = scmp.eq.s32.totalorder %s27, 3
      %p269 = por %p267, %p268
      %p270 = scmp.ne.s32.totalorder %s259, %s260
      %p271 = scmp.eq.s32.totalorder %s27, 0
      %p272 = por %p270, %p271
      %p273 = scmp.ne.s32.totalorder %s259, %s260
      %p274 = scmp.eq.s32.totalorder %s28, 3
      %p275 = por %p273, %p274
      %p277 = scmp.ne.s32.totalorder %s260, %s276
      %p278 = scmp.eq.s32.totalorder %s28, 0
      %p279 = por %p277, %p278
      %p280 = scmp.le.s32.totalorder 1, %s22
      %p281 = scmp.lt.s32.totalorder %s22, 5
      %p282 = pnand %p280, %p281
      %p283 = pneg %p282
      // Predicated region
      $region9: #{tpu_custom_call.1} parent=5 // pred_check
        _
      $region10: #{tpu_custom_call.1} parent=5 // pred_check_branch
        %285 = sbr.rel (%p282) target = $region12
      $region11: #{tpu_custom_call.1} parent=5 // pred_region
        %s286 = ssub.s32 %s22, 1
        // Predicated region
        $region13: #{tpu_custom_call.1} parent=11 // pred_check
          %p287 = pneg %p83
        $region14: #{tpu_custom_call.1} parent=11 // pred_check_branch
          %289 = sbr.rel (%p287) target = $region16
        $region15: #{tpu_custom_call.1} parent=11 // pred_region
          _
        $region16: #{tpu_custom_call.1} parent=11 // pred_fallthru
          _
        // Predicated region
        $region17: #{tpu_custom_call.1} parent=11 // pred_check
          %p290 = pneg %p104
        $region18: #{tpu_custom_call.1} parent=11 // pred_check_branch
          %292 = sbr.rel (%p290) target = $region20
        $region19: #{tpu_custom_call.1} parent=11 // pred_region
          _
        $region20: #{tpu_custom_call.1} parent=11 // pred_fallthru
          _
        // Predicated region
        $region21: #{tpu_custom_call.1} parent=11 // pred_check
          %p293 = pneg %p125
        $region22: #{tpu_custom_call.1} parent=11 // pred_check_branch
          %295 = sbr.rel (%p293) target = $region24
        $region23: #{tpu_custom_call.1} parent=11 // pred_region
          _
        $region24: #{tpu_custom_call.1} parent=11 // pred_fallthru
          _
        // Predicated region
        $region25: #{tpu_custom_call.1} parent=11 // pred_check
          %p296 = pneg %p146
        $region26: #{tpu_custom_call.1} parent=11 // pred_check_branch
          %298 = sbr.rel (%p296) target = $region28
        $region27: #{tpu_custom_call.1} parent=11 // pred_region
          _
        $region28: #{tpu_custom_call.1} parent=11 // pred_fallthru
          _
        // Predicated region
        $region29: #{tpu_custom_call.1} parent=11 // pred_check
          %p299 = pneg %p167
        $region30: #{tpu_custom_call.1} parent=11 // pred_check_branch
          %301 = sbr.rel (%p299) target = $region32
        $region31: #{tpu_custom_call.1} parent=11 // pred_region
          _
        $region32: #{tpu_custom_call.1} parent=11 // pred_fallthru
          _
        // Predicated region
        $region33: #{tpu_custom_call.1} parent=11 // pred_check
          %p302 = pneg %p188
        $region34: #{tpu_custom_call.1} parent=11 // pred_check_branch
          %304 = sbr.rel (%p302) target = $region36
        $region35: #{tpu_custom_call.1} parent=11 // pred_region
          _
        $region36: #{tpu_custom_call.1} parent=11 // pred_fallthru
          _
      $region12: #{tpu_custom_call.1} parent=5 // pred_fallthru
        _
      %p305 = scmp.lt.s32.totalorder %s22, 4
      // Predicated region
      $region37: #{tpu_custom_call.1} parent=5 // pred_check
        %p306 = pneg %p305
      $region38: #{tpu_custom_call.1} parent=5 // pred_check_branch
        %308 = sbr.rel (%p306) target = $region40
      $region39: #{tpu_custom_call.1} parent=5 // pred_region
        // Predicated region
        $region41: #{tpu_custom_call.1} parent=39 // pred_check
          %p309 = pneg %p56
        $region42: #{tpu_custom_call.1} parent=39 // pred_check_branch
          %311 = sbr.rel (%p309) target = $region44
        $region43: #{tpu_custom_call.1} parent=39 // pred_region
          %s312 = sand.u32 %s46, 1
          %s313 = sand.u32 %s46, 1
          %s314 = smul.addr %s313, 16
          %s315 = scalar_lea.vmem [#allocation2], %s314
          %s316 = smul.addr %s29, 4
          %s317 = sadd.s32 %s30, %s316
          %s318 = smul.addr %s317, 8
          %s319 = scalar_lea.vmem %s0, %s318
          // Predicated region
          $region45: #{tpu_custom_call.1} parent=43 // pred_check
            _
          $region46: #{tpu_custom_call.1} parent=43 // pred_check_branch
            %321 = sbr.rel (0) target = $region48
          $region47: #{tpu_custom_call.1} parent=43 // pred_region
            // Predicated region
            $region49: #{tpu_custom_call.1} parent=47 // pred_check
              _
            $region50: #{tpu_custom_call.1} parent=47 // pred_check_branch
              %323 = sbr.rel (0) target = $region52
            $region51: #{tpu_custom_call.1} parent=47 // pred_region
              // Predicated region
              $region64: #{tpu_custom_call.1} parent=51 // pred_check
                _
              $region65: #{tpu_custom_call.1} parent=51 // pred_check_branch
                %340 = sbr.rel (0) target = $region67
              $region66: #{tpu_custom_call.1} parent=51 // pred_region
                loop: start=0, step=1, limit=1
                $region68: #{tpu_custom_call.1} parent=66 // loop_pre_header
                  _
                $region69: #{tpu_custom_call.1} parent=66 // loop_header
                  %s342 = sphi 0, %s346
                  %p343 = scmp.ge.s32.totalorder %s342, 1
                  %s347 = sphi %s319, %s319
                  %s348 = sphi %s315, %s315
                $region70: #{tpu_custom_call.1} parent=66 // loop_header_branch
                  %345 = sbr.rel (%p343) target = $region74
                $region71: #{tpu_custom_call.1} parent=66 // loop_body
                  %v349 = vld [vmem:[%s347] sm:$0xff]
                  %350 = vst [vmem:[%s348] sm:$0xff] %v349
                  %v351 = vld [vmem:[%s347 + $0x10] sm:$0xff]
                  %352 = vst [vmem:[%s348 + $0x8] sm:$0xff] %v351
                $region72: #{tpu_custom_call.1} parent=66 // loop_footer
                  %s346 = sadd.s32 1, %s342
                $region73: #{tpu_custom_call.1} parent=66 // loop_footer_branch
                  %341 = sbr.rel target = $region69
                $region74: #{tpu_custom_call.1} parent=66 // loop_exit
                  _
              $region67: #{tpu_custom_call.1} parent=51 // pred_fallthru
                _
              // Predicated region
              $region75: #{tpu_custom_call.1} parent=51 // pred_check
                _
              $region76: #{tpu_custom_call.1} parent=51 // pred_check_branch
                %354 = sbr.rel target = $region78
              $region77: #{tpu_custom_call.1} parent=51 // pred_region
                _
              $region78: #{tpu_custom_call.1} parent=51 // pred_fallthru
                _
            $region52: #{tpu_custom_call.1} parent=47 // pred_fallthru
              _
            // Predicated region
            $region53: #{tpu_custom_call.1} parent=47 // pred_check
              _
            $region54: #{tpu_custom_call.1} parent=47 // pred_check_branch
              %325 = sbr.rel target = $region56
            $region55: #{tpu_custom_call.1} parent=47 // pred_region
              loop: start=0, step=1, limit=1
              $region57: #{tpu_custom_call.1} parent=55 // loop_pre_header
                _
              $region58: #{tpu_custom_call.1} parent=55 // loop_header
                %s328 = sphi 0, %s332
                %p329 = scmp.ge.s32.totalorder %s328, 1
                %s333 = sphi %s319, %s319
                %s334 = sphi %s315, %s315
              $region59: #{tpu_custom_call.1} parent=55 // loop_header_branch
                %331 = sbr.rel (%p329) target = $region63
              $region60: #{tpu_custom_call.1} parent=55 // loop_body
                %v335 = vld [vmem:[%s333] sm:$0xff]
                %336 = vst [vmem:[%s334] sm:$0xff] %v335
                %v337 = vld [vmem:[%s333 + $0x10] sm:$0xff]
                %338 = vst [vmem:[%s334 + $0x8] sm:$0xff] %v337
              $region61: #{tpu_custom_call.1} parent=55 // loop_footer
                %s332 = sadd.s32 1, %s328
              $region62: #{tpu_custom_call.1} parent=55 // loop_footer_branch
                %327 = sbr.rel target = $region58
              $region63: #{tpu_custom_call.1} parent=55 // loop_exit
                _
            $region56: #{tpu_custom_call.1} parent=47 // pred_fallthru
              _
          $region48: #{tpu_custom_call.1} parent=43 // pred_fallthru
            _
          %355 = vnop
        $region44: #{tpu_custom_call.1} parent=39 // pred_fallthru
          _
      $region40: #{tpu_custom_call.1} parent=5 // pred_fallthru
        _
      %p356 = scmp.le.s32.totalorder 1, %s22
      %p357 = scmp.lt.s32.totalorder %s22, 5
      %p358 = pnand %p356, %p357
      %p359 = pneg %p358
      // Predicated region
      $region79: #{tpu_custom_call.1} parent=5 // pred_check
        _
      $region80: #{tpu_custom_call.1} parent=5 // pred_check_branch
        %361 = sbr.rel (%p358) target = $region82
      $region81: #{tpu_custom_call.1} parent=5 // pred_region
        %s362 = ssub.s32 %s22, 1
        %s363 = sand.u32 %s49, 1
        %s364 = sand.u32 %s49, 1
        %s365 = smul.addr %s364, 16
        %s366 = scalar_lea.vmem [#allocation2], %s365
        // Predicated region
        $region83: #{tpu_custom_call.1} parent=81 // pred_check
          %p367 = pneg %p62
        $region84: #{tpu_custom_call.1} parent=81 // pred_check_branch
          %369 = sbr.rel (%p367) target = $region86
        $region85: #{tpu_custom_call.1} parent=81 // pred_region
          _
        $region86: #{tpu_custom_call.1} parent=81 // pred_fallthru
          _
        %s370 = sand.u32 %s49, 1
        %s371 = sand.u32 %s49, 1
        %s372 = smul.addr %s371, 16
        %s373 = scalar_lea.vmem [#allocation2], %s372
        %p374 = pneg %p62
        %p375 = pneg %p59
        %p376 = pneg %p83
        %p377 = pneg %p80
        %p378 = pneg %p104
        %p379 = pneg %p101
        %p380 = pneg %p125
        %p381 = pneg %p122
        %p382 = pneg %p146
        %p383 = pneg %p143
        %p384 = pneg %p167
        %p385 = pneg %p164
        %p386 = pneg %p188
        %p387 = pneg %p185
        %p388 = pneg %p216
        %p389 = pneg %p213
        %s390 = sand.u32 %s203, 1
        %s391 = scalar_lea.sflag [#allocation4], %s390
        %s392 = sand.u32 %s203, 1
        %s393 = smul.addr %s392, 64
        %s394 = scalar_lea.vmem [#allocation3], %s393
        %p395 = pneg %p244
        %p396 = pneg %p241
        %s397 = sand.u32 %s27, 1
        %s398 = scalar_lea.sflag [#allocation6], %s397
        %s399 = sand.u32 %s231, 1
        %s400 = smul.addr %s399, 64
        %s401 = scalar_lea.vmem [#allocation5], %s400
        %p402 = pneg %p272
        %p403 = pneg %p269
        %s404 = sand.u32 %s27, 1
        %s405 = scalar_lea.sflag [#allocation6], %s404
        %s406 = sand.u32 %s259, 1
        %s407 = smul.addr %s406, 8
        %s408 = scalar_lea.vmem [#allocation7], %s407
        %v409 = vld [vmem:[%s366] sm:$0xff]
        %v410 = vld [vmem:[%s366 + $0x8] sm:$0xff]
        %v411 = vld [vmem:[%s1] sm:$0xff]
        %v412 = vld [vmem:[%s1 + $0x8] sm:$0xff]
        %v413 = vld [vmem:[%s1 + $0x10] sm:$0xff]
        %v414 = vld [vmem:[%s1 + $0x18] sm:$0xff]
        %v415 = vld [vmem:[%s1 + $0x20] sm:$0xff]
        %v416 = vld [vmem:[%s1 + $0x28] sm:$0xff]
        %v417 = vld [vmem:[%s1 + $0x30] sm:$0xff]
        %v418 = vld [vmem:[%s1 + $0x38] sm:$0xff]
        %v419 = vld [vmem:[%s1 + $0x40] sm:$0xff]
        %v420 = vld [vmem:[%s1 + $0x48] sm:$0xff]
        %v421 = vld [vmem:[%s1 + $0x50] sm:$0xff]
        %v422 = vld [vmem:[%s1 + $0x58] sm:$0xff]
        %v423 = vld [vmem:[%s1 + $0x60] sm:$0xff]
        %v424 = vld [vmem:[%s1 + $0x68] sm:$0xff]
        %v425 = vld [vmem:[%s1 + $0x70] sm:$0xff]
        %v426 = vld [vmem:[%s1 + $0x78] sm:$0xff]
        %v427 = vld [vmem:[%s2] sm:$0xff]
        %v428 = vld [vmem:[%s2 + $0x8] sm:$0xff]
        %v429 = vld [vmem:[%s2 + $0x10] sm:$0xff]
        %v430 = vld [vmem:[%s2 + $0x18] sm:$0xff]
        %v431 = vld [vmem:[%s2 + $0x20] sm:$0xff]
        %v432 = vld [vmem:[%s2 + $0x28] sm:$0xff]
        %v433 = vld [vmem:[%s2 + $0x30] sm:$0xff]
        %v434 = vld [vmem:[%s2 + $0x38] sm:$0xff]
        %v435 = vld [vmem:[%s2 + $0x40] sm:$0xff]
        %v436 = vld [vmem:[%s2 + $0x48] sm:$0xff]
        %v437 = vld [vmem:[%s2 + $0x50] sm:$0xff]
        %v438 = vld [vmem:[%s2 + $0x58] sm:$0xff]
        %v439 = vld [vmem:[%s2 + $0x60] sm:$0xff]
        %v440 = vld [vmem:[%s2 + $0x68] sm:$0xff]
        %v441 = vld [vmem:[%s2 + $0x70] sm:$0xff]
        %v442 = vld [vmem:[%s2 + $0x78] sm:$0xff]
        %444 = vset.pattern.permute.xlu0 0
        %445 = vperm.xlu0 %444, %v427
        %v446 = vpop.permute.xlu0 %445
        %449 = vset.pattern.permute.xlu0 0
        %450 = vperm.xlu0 %449, %v428
        %v451 = vpop.permute.xlu0 %450
        %454 = vset.pattern.permute.xlu0 0
        %455 = vperm.xlu0 %454, %v429
        %v456 = vpop.permute.xlu0 %455
        %459 = vset.pattern.permute.xlu0 0
        %460 = vperm.xlu0 %459, %v430
        %v461 = vpop.permute.xlu0 %460
        %464 = vset.pattern.permute.xlu0 0
        %465 = vperm.xlu0 %464, %v431
        %v466 = vpop.permute.xlu0 %465
        %469 = vset.pattern.permute.xlu0 0
        %470 = vperm.xlu0 %469, %v432
        %v471 = vpop.permute.xlu0 %470
        %474 = vset.pattern.permute.xlu0 0
        %475 = vperm.xlu0 %474, %v433
        %v476 = vpop.permute.xlu0 %475
        %479 = vset.pattern.permute.xlu0 0
        %480 = vperm.xlu0 %479, %v434
        %v481 = vpop.permute.xlu0 %480
        %484 = vset.pattern.permute.xlu0 0
        %485 = vperm.xlu0 %484, %v435
        %v486 = vpop.permute.xlu0 %485
        %489 = vset.pattern.permute.xlu0 0
        %490 = vperm.xlu0 %489, %v436
        %v491 = vpop.permute.xlu0 %490
        %494 = vset.pattern.permute.xlu0 0
        %495 = vperm.xlu0 %494, %v437
        %v496 = vpop.permute.xlu0 %495
        %499 = vset.pattern.permute.xlu0 0
        %500 = vperm.xlu0 %499, %v438
        %v501 = vpop.permute.xlu0 %500
        %504 = vset.pattern.permute.xlu0 0
        %505 = vperm.xlu0 %504, %v439
        %v506 = vpop.permute.xlu0 %505
        %509 = vset.pattern.permute.xlu0 0
        %510 = vperm.xlu0 %509, %v440
        %v511 = vpop.permute.xlu0 %510
        %514 = vset.pattern.permute.xlu0 0
        %515 = vperm.xlu0 %514, %v441
        %v516 = vpop.permute.xlu0 %515
        %519 = vset.pattern.permute.xlu0 0
        %520 = vperm.xlu0 %519, %v442
        %v521 = vpop.permute.xlu0 %520
        %vm523 = vcmask 130048
        %v525 = vsel %vm523, %v411, 0
        %v528 = vsel %vm523, %v412, 0
        %v531 = vsel %vm523, %v413, 0
        %v534 = vsel %vm523, %v414, 0
        %v537 = vsel %vm523, %v415, 0
        %v540 = vsel %vm523, %v416, 0
        %v543 = vsel %vm523, %v417, 0
        %v546 = vsel %vm523, %v418, 0
        %v549 = vsel %vm523, %v419, 0
        %v552 = vsel %vm523, %v420, 0
        %v555 = vsel %vm523, %v421, 0
        %v558 = vsel %vm523, %v422, 0
        %v561 = vsel %vm523, %v423, 0
        %v564 = vsel %vm523, %v424, 0
        %v567 = vsel %vm523, %v425, 0
        %v570 = vsel %vm523, %v426, 0
        %572 = vmatprep.subr.mxu0 0.0
        %573 = vmatpush1.msra.mxu0 %v409
        %574 = vmatprep.subr.mxu0 0.0
        %575 = vmatpush1.msra.mxu0 %v410
        %576 = vmatprep.subr.mxu0 0.0
        %577 = vmatpush1.msra.mxu0 0.0
        %578 = vmatprep.subr.mxu0 0.0
        %579 = vmatpush1.msra.mxu0 0.0
        %580 = vmatprep.subr.mxu0 0.0
        %581 = vmatpush1.msra.mxu0 0.0
        %582 = vmatprep.subr.mxu0 0.0
        %583 = vmatpush1.msra.mxu0 0.0
        %584 = vmatprep.subr.mxu0 0.0
        %585 = vmatpush1.msra.mxu0 0.0
        %586 = vmatprep.subr.mxu0 0.0
        %587 = vmatpush1.msra.mxu0 0.0
        %588 = vmatprep.subr.mxu0 0.0
        %589 = vmatpush1.msra.mxu0 0.0
        %590 = vmatprep.subr.mxu0 0.0
        %591 = vmatpush1.msra.mxu0 0.0
        %592 = vmatprep.subr.mxu0 0.0
        %593 = vmatpush1.msra.mxu0 0.0
        %594 = vmatprep.subr.mxu0 0.0
        %595 = vmatpush1.msra.mxu0 0.0
        %596 = vmatprep.subr.mxu0 0.0
        %597 = vmatpush1.msra.mxu0 0.0
        %598 = vmatprep.subr.mxu0 0.0
        %599 = vmatpush1.msra.mxu0 0.0
        %600 = vmatprep.subr.mxu0 0.0
        %601 = vmatpush1.msra.mxu0 0.0
        %602 = vmatprep.subr.mxu0 0.0
        %603 = vmatpush1.msra.mxu0 0.0
        %604 = vmatprep.subr.mxu0 0.0
        %605 = vmatpush1.msra.mxu0 0.0
        %606 = vmatprep.subr.mxu0 0.0
        %607 = vmatpush1.msra.mxu0 0.0
        %608 = vmatprep.subr.mxu0 0.0
        %609 = vmatpush1.msra.mxu0 0.0
        %610 = vmatprep.subr.mxu0 0.0
        %611 = vmatpush1.msra.mxu0 0.0
        %612 = vmatprep.subr.mxu0 0.0
        %613 = vmatpush1.msra.mxu0 0.0
        %614 = vmatprep.subr.mxu0 0.0
        %615 = vmatpush1.msra.mxu0 0.0
        %616 = vmatprep.subr.mxu0 0.0
        %617 = vmatpush1.msra.mxu0 0.0
        %618 = vmatprep.subr.mxu0 0.0
        %619 = vmatpush1.msra.mxu0 0.0
        %620 = vmatprep.subr.mxu0 0.0
        %621 = vmatpush1.msra.mxu0 0.0
        %622 = vmatprep.subr.mxu0 0.0
        %623 = vmatpush1.msra.mxu0 0.0
        %624 = vmatprep.subr.mxu0 0.0
        %625 = vmatpush1.msra.mxu0 0.0
        %626 = vmatprep.subr.mxu0 0.0
        %627 = vmatpush1.msra.mxu0 0.0
        %628 = vmatprep.subr.mxu0 0.0
        %629 = vmatpush1.msra.mxu0 0.0
        %630 = vmatprep.subr.mxu0 0.0
        %631 = vmatpush1.msra.mxu0 0.0
        %632 = vmatprep.subr.mxu0 0.0
        %633 = vmatpush1.msra.mxu0 0.0
        %634 = vmatprep.subr.mxu0 0.0
        %635 = vmatpush1.msra.mxu0 0.0
        %636 = vmatprep.mubr.f32.mxu0 0.0
        %637 = vmatmul.mubr.f32.gmra.mrb[0].mxu0 %v525
        %v638 = vpop.f32.mrb[0].mxu0
        %v639 = vadd.f32 %v446, %v638
        %v640 = vpop.f32.mrb[0].mxu0
        %641 = vmatprep.mubr.f32.mxu0 0.0
        %642 = vmatmul.mubr.f32.gmra.mrb[0].mxu0 %v528
        %v643 = vpop.f32.mrb[0].mxu0
        %v644 = vadd.f32 %v451, %v643
        %v645 = vpop.f32.mrb[0].mxu0
        %646 = vmatprep.mubr.f32.mxu0 0.0
        %647 = vmatmul.mubr.f32.gmra.mrb[0].mxu0 %v531
        %v648 = vpop.f32.mrb[0].mxu0
        %v649 = vadd.f32 %v456, %v648
        %v650 = vpop.f32.mrb[0].mxu0
        %651 = vmatprep.mubr.f32.mxu0 0.0
        %652 = vmatmul.mubr.f32.gmra.mrb[0].mxu0 %v534
        %v653 = vpop.f32.mrb[0].mxu0
        %v654 = vadd.f32 %v461, %v653
        %v655 = vpop.f32.mrb[0].mxu0
        %656 = vmatprep.mubr.f32.mxu0 0.0
        %657 = vmatmul.mubr.f32.gmra.mrb[0].mxu0 %v537
        %v658 = vpop.f32.mrb[0].mxu0
        %v659 = vadd.f32 %v466, %v658
        %v660 = vpop.f32.mrb[0].mxu0
        %661 = vmatprep.mubr.f32.mxu0 0.0
        %662 = vmatmul.mubr.f32.gmra.mrb[0].mxu0 %v540
        %v663 = vpop.f32.mrb[0].mxu0
        %v664 = vadd.f32 %v471, %v663
        %v665 = vpop.f32.mrb[0].mxu0
        %666 = vmatprep.mubr.f32.mxu0 0.0
        %667 = vmatmul.mubr.f32.gmra.mrb[0].mxu0 %v543
        %v668 = vpop.f32.mrb[0].mxu0
        %v669 = vadd.f32 %v476, %v668
        %v670 = vpop.f32.mrb[0].mxu0
        %671 = vmatprep.mubr.f32.mxu0 0.0
        %672 = vmatmul.mubr.f32.gmra.mrb[0].mxu0 %v546
        %v673 = vpop.f32.mrb[0].mxu0
        %v674 = vadd.f32 %v481, %v673
        %v675 = vpop.f32.mrb[0].mxu0
        %676 = vmatprep.mubr.f32.mxu0 0.0
        %677 = vmatmul.mubr.f32.gmra.mrb[0].mxu0 %v549
        %v678 = vpop.f32.mrb[0].mxu0
        %v679 = vadd.f32 %v486, %v678
        %v680 = vpop.f32.mrb[0].mxu0
        %681 = vmatprep.mubr.f32.mxu0 0.0
        %682 = vmatmul.mubr.f32.gmra.mrb[0].mxu0 %v552
        %v683 = vpop.f32.mrb[0].mxu0
        %v684 = vadd.f32 %v491, %v683
        %v685 = vpop.f32.mrb[0].mxu0
        %686 = vmatprep.mubr.f32.mxu0 0.0
        %687 = vmatmul.mubr.f32.gmra.mrb[0].mxu0 %v555
        %v688 = vpop.f32.mrb[0].mxu0
        %v689 = vadd.f32 %v496, %v688
        %v690 = vpop.f32.mrb[0].mxu0
        %691 = vmatprep.mubr.f32.mxu0 0.0
        %692 = vmatmul.mubr.f32.gmra.mrb[0].mxu0 %v558
        %v693 = vpop.f32.mrb[0].mxu0
        %v694 = vadd.f32 %v501, %v693
        %v695 = vpop.f32.mrb[0].mxu0
        %696 = vmatprep.mubr.f32.mxu0 0.0
        %697 = vmatmul.mubr.f32.gmra.mrb[0].mxu0 %v561
        %v698 = vpop.f32.mrb[0].mxu0
        %v699 = vadd.f32 %v506, %v698
        %v700 = vpop.f32.mrb[0].mxu0
        %701 = vmatprep.mubr.f32.mxu0 0.0
        %702 = vmatmul.mubr.f32.gmra.mrb[0].mxu0 %v564
        %v703 = vpop.f32.mrb[0].mxu0
        %v704 = vadd.f32 %v511, %v703
        %v705 = vpop.f32.mrb[0].mxu0
        %706 = vmatprep.mubr.f32.mxu0 0.0
        %707 = vmatmul.mubr.f32.gmra.mrb[0].mxu0 %v567
        %v708 = vpop.f32.mrb[0].mxu0
        %v709 = vadd.f32 %v516, %v708
        %v710 = vpop.f32.mrb[0].mxu0
        %711 = vmatprep.mubr.f32.mxu0 0.0
        %712 = vmatmul.mubr.f32.gmra.mrb[0].mxu0 %v570
        %v713 = vpop.f32.mrb[0].mxu0
        %v714 = vadd.f32 %v521, %v713
        %v715 = vpop.f32.mrb[0].mxu0
        %716 = vdwg.mxu0
        %v717 = vld [vmem:[%s3] sm:$0xff]
        %v718 = vld [vmem:[%s3 + $0x8] sm:$0xff]
        %v719 = vld [vmem:[%s3 + $0x10] sm:$0xff]
        %v720 = vld [vmem:[%s3 + $0x18] sm:$0xff]
        %v721 = vld [vmem:[%s3 + $0x20] sm:$0xff]
        %v722 = vld [vmem:[%s3 + $0x28] sm:$0xff]
        %v723 = vld [vmem:[%s3 + $0x30] sm:$0xff]
        %v724 = vld [vmem:[%s3 + $0x38] sm:$0xff]
        %v725 = vld [vmem:[%s3 + $0x40] sm:$0xff]
        %v726 = vld [vmem:[%s3 + $0x48] sm:$0xff]
        %v727 = vld [vmem:[%s3 + $0x50] sm:$0xff]
        %v728 = vld [vmem:[%s3 + $0x58] sm:$0xff]
        %v729 = vld [vmem:[%s3 + $0x60] sm:$0xff]
        %v730 = vld [vmem:[%s3 + $0x68] sm:$0xff]
        %v731 = vld [vmem:[%s3 + $0x70] sm:$0xff]
        %v732 = vld [vmem:[%s3 + $0x78] sm:$0xff]
        %v733 = vld [vmem:[%s4] sm:$0xff]
        %v734 = vld [vmem:[%s4 + $0x8] sm:$0xff]
        %v735 = vld [vmem:[%s4 + $0x10] sm:$0xff]
        %v736 = vld [vmem:[%s4 + $0x18] sm:$0xff]
        %v737 = vld [vmem:[%s4 + $0x20] sm:$0xff]
        %v738 = vld [vmem:[%s4 + $0x28] sm:$0xff]
        %v739 = vld [vmem:[%s4 + $0x30] sm:$0xff]
        %v740 = vld [vmem:[%s4 + $0x38] sm:$0xff]
        %v741 = vld [vmem:[%s4 + $0x40] sm:$0xff]
        %v742 = vld [vmem:[%s4 + $0x48] sm:$0xff]
        %v743 = vld [vmem:[%s4 + $0x50] sm:$0xff]
        %v744 = vld [vmem:[%s4 + $0x58] sm:$0xff]
        %v745 = vld [vmem:[%s4 + $0x60] sm:$0xff]
        %v746 = vld [vmem:[%s4 + $0x68] sm:$0xff]
        %v747 = vld [vmem:[%s4 + $0x70] sm:$0xff]
        %v748 = vld [vmem:[%s4 + $0x78] sm:$0xff]
        %750 = vset.pattern.permute.xlu0 0
        %751 = vperm.xlu0 %750, %v733
        %v752 = vpop.permute.xlu0 %751
        %755 = vset.pattern.permute.xlu0 0
        %756 = vperm.xlu0 %755, %v734
        %v757 = vpop.permute.xlu0 %756
        %760 = vset.pattern.permute.xlu0 0
        %761 = vperm.xlu0 %760, %v735
        %v762 = vpop.permute.xlu0 %761
        %765 = vset.pattern.permute.xlu0 0
        %766 = vperm.xlu0 %765, %v736
        %v767 = vpop.permute.xlu0 %766
        %770 = vset.pattern.permute.xlu0 0
        %771 = vperm.xlu0 %770, %v737
        %v772 = vpop.permute.xlu0 %771
        %775 = vset.pattern.permute.xlu0 0
        %776 = vperm.xlu0 %775, %v738
        %v777 = vpop.permute.xlu0 %776
        %780 = vset.pattern.permute.xlu0 0
        %781 = vperm.xlu0 %780, %v739
        %v782 = vpop.permute.xlu0 %781
        %785 = vset.pattern.permute.xlu0 0
        %786 = vperm.xlu0 %785, %v740
        %v787 = vpop.permute.xlu0 %786
        %790 = vset.pattern.permute.xlu0 0
        %791 = vperm.xlu0 %790, %v741
        %v792 = vpop.permute.xlu0 %791
        %795 = vset.pattern.permute.xlu0 0
        %796 = vperm.xlu0 %795, %v742
        %v797 = vpop.permute.xlu0 %796
        %800 = vset.pattern.permute.xlu0 0
        %801 = vperm.xlu0 %800, %v743
        %v802 = vpop.permute.xlu0 %801
        %805 = vset.pattern.permute.xlu0 0
        %806 = vperm.xlu0 %805, %v744
        %v807 = vpop.permute.xlu0 %806
        %810 = vset.pattern.permute.xlu0 0
        %811 = vperm.xlu0 %810, %v745
        %v812 = vpop.permute.xlu0 %811
        %815 = vset.pattern.permute.xlu0 0
        %816 = vperm.xlu0 %815, %v746
        %v817 = vpop.permute.xlu0 %816
        %820 = vset.pattern.permute.xlu0 0
        %821 = vperm.xlu0 %820, %v747
        %v822 = vpop.permute.xlu0 %821
        %825 = vset.pattern.permute.xlu0 0
        %826 = vperm.xlu0 %825, %v748
        %v827 = vpop.permute.xlu0 %826
        %v830 = vsel %vm523, %v717, 0
        %v833 = vsel %vm523, %v718, 0
        %v836 = vsel %vm523, %v719, 0
        %v839 = vsel %vm523, %v720, 0
        %v842 = vsel %vm523, %v721, 0
        %v845 = vsel %vm523, %v722, 0
        %v848 = vsel %vm523, %v723, 0
        %v851 = vsel %vm523, %v724, 0
        %v854 = vsel %vm523, %v725, 0
        %v857 = vsel %vm523, %v726, 0
        %v860 = vsel %vm523, %v727, 0
        %v863 = vsel %vm523, %v728, 0
        %v866 = vsel %vm523, %v729, 0
        %v869 = vsel %vm523, %v730, 0
        %v872 = vsel %vm523, %v731, 0
        %v875 = vsel %vm523, %v732, 0
        %877 = vmatprep.subr.mxu0 0.0
        %878 = vmatpush1.msra.mxu0 %v409
        %879 = vmatprep.subr.mxu0 0.0
        %880 = vmatpush1.msra.mxu0 %v410
        %881 = vmatprep.subr.mxu0 0.0
        %882 = vmatpush1.msra.mxu0 0.0
        %883 = vmatprep.subr.mxu0 0.0
        %884 = vmatpush1.msra.mxu0 0.0
        %885 = vmatprep.subr.mxu0 0.0
        %886 = vmatpush1.msra.mxu0 0.0
        %887 = vmatprep.subr.mxu0 0.0
        %888 = vmatpush1.msra.mxu0 0.0
        %889 = vmatprep.subr.mxu0 0.0
        %890 = vmatpush1.msra.mxu0 0.0
        %891 = vmatprep.subr.mxu0 0.0
        %892 = vmatpush1.msra.mxu0 0.0
        %893 = vmatprep.subr.mxu0 0.0
        %894 = vmatpush1.msra.mxu0 0.0
        %895 = vmatprep.subr.mxu0 0.0
        %896 = vmatpush1.msra.mxu0 0.0
        %897 = vmatprep.subr.mxu0 0.0
        %898 = vmatpush1.msra.mxu0 0.0
        %899 = vmatprep.subr.mxu0 0.0
        %900 = vmatpush1.msra.mxu0 0.0
        %901 = vmatprep.subr.mxu0 0.0
        %902 = vmatpush1.msra.mxu0 0.0
        %903 = vmatprep.subr.mxu0 0.0
        %904 = vmatpush1.msra.mxu0 0.0
        %905 = vmatprep.subr.mxu0 0.0
        %906 = vmatpush1.msra.mxu0 0.0
        %907 = vmatprep.subr.mxu0 0.0
        %908 = vmatpush1.msra.mxu0 0.0
        %909 = vmatprep.subr.mxu0 0.0
        %910 = vmatpush1.msra.mxu0 0.0
        %911 = vmatprep.subr.mxu0 0.0
        %912 = vmatpush1.msra.mxu0 0.0
        %913 = vmatprep.subr.mxu0 0.0
        %914 = vmatpush1.msra.mxu0 0.0
        %915 = vmatprep.subr.mxu0 0.0
        %916 = vmatpush1.msra.mxu0 0.0
        %917 = vmatprep.subr.mxu0 0.0
        %918 = vmatpush1.msra.mxu0 0.0
        %919 = vmatprep.subr.mxu0 0.0
        %920 = vmatpush1.msra.mxu0 0.0
        %921 = vmatprep.subr.mxu0 0.0
        %922 = vmatpush1.msra.mxu0 0.0
        %923 = vmatprep.subr.mxu0 0.0
        %924 = vmatpush1.msra.mxu0 0.0
        %925 = vmatprep.subr.mxu0 0.0
        %926 = vmatpush1.msra.mxu0 0.0
        %927 = vmatprep.subr.mxu0 0.0
        %928 = vmatpush1.msra.mxu0 0.0
        %929 = vmatprep.subr.mxu0 0.0
        %930 = vmatpush1.msra.mxu0 0.0
        %931 = vmatprep.subr.mxu0 0.0
        %932 = vmatpush1.msra.mxu0 0.0
        %933 = vmatprep.subr.mxu0 0.0
        %934 = vmatpush1.msra.mxu0 0.0
        %935 = vmatprep.subr.mxu0 0.0
        %936 = vmatpush1.msra.mxu0 0.0
        %937 = vmatprep.subr.mxu0 0.0
        %938 = vmatpush1.msra.mxu0 0.0
        %939 = vmatprep.subr.mxu0 0.0
        %940 = vmatpush1.msra.mxu0 0.0
        %941 = vmatprep.mubr.f32.mxu0 0.0
        %942 = vmatmul.mubr.f32.gmra.mrb[0].mxu0 %v830
        %v943 = vpop.f32.mrb[0].mxu0
        %v944 = vadd.f32 %v752, %v943
        %v945 = vpop.f32.mrb[0].mxu0
        %946 = vmatprep.mubr.f32.mxu0 0.0
        %947 = vmatmul.mubr.f32.gmra.mrb[0].mxu0 %v833
        %v948 = vpop.f32.mrb[0].mxu0
        %v949 = vadd.f32 %v757, %v948
        %v950 = vpop.f32.mrb[0].mxu0
        %951 = vmatprep.mubr.f32.mxu0 0.0
        %952 = vmatmul.mubr.f32.gmra.mrb[0].mxu0 %v836
        %v953 = vpop.f32.mrb[0].mxu0
        %v954 = vadd.f32 %v762, %v953
        %v955 = vpop.f32.mrb[0].mxu0
        %956 = vmatprep.mubr.f32.mxu0 0.0
        %957 = vmatmul.mubr.f32.gmra.mrb[0].mxu0 %v839
        %v958 = vpop.f32.mrb[0].mxu0
        %v959 = vadd.f32 %v767, %v958
        %v960 = vpop.f32.mrb[0].mxu0
        %961 = vmatprep.mubr.f32.mxu0 0.0
        %962 = vmatmul.mubr.f32.gmra.mrb[0].mxu0 %v842
        %v963 = vpop.f32.mrb[0].mxu0
        %v964 = vadd.f32 %v772, %v963
        %v965 = vpop.f32.mrb[0].mxu0
        %966 = vmatprep.mubr.f32.mxu0 0.0
        %967 = vmatmul.mubr.f32.gmra.mrb[0].mxu0 %v845
        %v968 = vpop.f32.mrb[0].mxu0
        %v969 = vadd.f32 %v777, %v968
        %v970 = vpop.f32.mrb[0].mxu0
        %971 = vmatprep.mubr.f32.mxu0 0.0
        %972 = vmatmul.mubr.f32.gmra.mrb[0].mxu0 %v848
        %v973 = vpop.f32.mrb[0].mxu0
        %v974 = vadd.f32 %v782, %v973
        %v975 = vpop.f32.mrb[0].mxu0
        %976 = vmatprep.mubr.f32.mxu0 0.0
        %977 = vmatmul.mubr.f32.gmra.mrb[0].mxu0 %v851
        %v978 = vpop.f32.mrb[0].mxu0
        %v979 = vadd.f32 %v787, %v978
        %v980 = vpop.f32.mrb[0].mxu0
        %981 = vmatprep.mubr.f32.mxu0 0.0
        %982 = vmatmul.mubr.f32.gmra.mrb[0].mxu0 %v854
        %v983 = vpop.f32.mrb[0].mxu0
        %v984 = vadd.f32 %v792, %v983
        %v985 = vpop.f32.mrb[0].mxu0
        %986 = vmatprep.mubr.f32.mxu0 0.0
        %987 = vmatmul.mubr.f32.gmra.mrb[0].mxu0 %v857
        %v988 = vpop.f32.mrb[0].mxu0
        %v989 = vadd.f32 %v797, %v988
        %v990 = vpop.f32.mrb[0].mxu0
        %991 = vmatprep.mubr.f32.mxu0 0.0
        %992 = vmatmul.mubr.f32.gmra.mrb[0].mxu0 %v860
        %v993 = vpop.f32.mrb[0].mxu0
        %v994 = vadd.f32 %v802, %v993
        %v995 = vpop.f32.mrb[0].mxu0
        %996 = vmatprep.mubr.f32.mxu0 0.0
        %997 = vmatmul.mubr.f32.gmra.mrb[0].mxu0 %v863
        %v998 = vpop.f32.mrb[0].mxu0
        %v999 = vadd.f32 %v807, %v998
        %v1000 = vpop.f32.mrb[0].mxu0
        %1001 = vmatprep.mubr.f32.mxu0 0.0
        %1002 = vmatmul.mubr.f32.gmra.mrb[0].mxu0 %v866
        %v1003 = vpop.f32.mrb[0].mxu0
        %v1004 = vadd.f32 %v812, %v1003
        %v1005 = vpop.f32.mrb[0].mxu0
        %1006 = vmatprep.mubr.f32.mxu0 0.0
        %1007 = vmatmul.mubr.f32.gmra.mrb[0].mxu0 %v869
        %v1008 = vpop.f32.mrb[0].mxu0
        %v1009 = vadd.f32 %v817, %v1008
        %v1010 = vpop.f32.mrb[0].mxu0
        %1011 = vmatprep.mubr.f32.mxu0 0.0
        %1012 = vmatmul.mubr.f32.gmra.mrb[0].mxu0 %v872
        %v1013 = vpop.f32.mrb[0].mxu0
        %v1014 = vadd.f32 %v822, %v1013
        %v1015 = vpop.f32.mrb[0].mxu0
        %1016 = vmatprep.mubr.f32.mxu0 0.0
        %1017 = vmatmul.mubr.f32.gmra.mrb[0].mxu0 %v875
        %v1018 = vpop.f32.mrb[0].mxu0
        %v1019 = vadd.f32 %v827, %v1018
        %v1020 = vpop.f32.mrb[0].mxu0
        %1021 = vdwg.mxu0
        %v1022 = vld [vmem:[%s5] sm:$0xff]
        %v1023 = vld [vmem:[%s5 + $0x8] sm:$0xff]
        %v1024 = vld [vmem:[%s6] sm:$0xff]
        %v1025 = vld [vmem:[%s6 + $0x8] sm:$0xff]
        %1027 = vset.pattern.permute.xlu0 0
        %1028 = vperm.xlu0 %1027, %v1024
        %v1029 = vpop.permute.xlu0 %1028
        %1032 = vset.pattern.permute.xlu0 0
        %1033 = vperm.xlu0 %1032, %v1025
        %v1034 = vpop.permute.xlu0 %1033
        %v1037 = vsel %vm523, %v1022, 0
        %v1040 = vsel %vm523, %v1023, 0
        %1042 = vmatprep.subr.mxu0 0.0
        %1043 = vmatpush1.msra.mxu0 %v409
        %1044 = vmatprep.subr.mxu0 0.0
        %1045 = vmatpush1.msra.mxu0 %v410
        %1046 = vmatprep.subr.mxu0 0.0
        %1047 = vmatpush1.msra.mxu0 0.0
        %1048 = vmatprep.subr.mxu0 0.0
        %1049 = vmatpush1.msra.mxu0 0.0
        %1050 = vmatprep.subr.mxu0 0.0
        %1051 = vmatpush1.msra.mxu0 0.0
        %1052 = vmatprep.subr.mxu0 0.0
        %1053 = vmatpush1.msra.mxu0 0.0
        %1054 = vmatprep.subr.mxu0 0.0
        %1055 = vmatpush1.msra.mxu0 0.0
        %1056 = vmatprep.subr.mxu0 0.0
        %1057 = vmatpush1.msra.mxu0 0.0
        %1058 = vmatprep.subr.mxu0 0.0
        %1059 = vmatpush1.msra.mxu0 0.0
        %1060 = vmatprep.subr.mxu0 0.0
        %1061 = vmatpush1.msra.mxu0 0.0
        %1062 = vmatprep.subr.mxu0 0.0
        %1063 = vmatpush1.msra.mxu0 0.0
        %1064 = vmatprep.subr.mxu0 0.0
        %1065 = vmatpush1.msra.mxu0 0.0
        %1066 = vmatprep.subr.mxu0 0.0
        %1067 = vmatpush1.msra.mxu0 0.0
        %1068 = vmatprep.subr.mxu0 0.0
        %1069 = vmatpush1.msra.mxu0 0.0
        %1070 = vmatprep.subr.mxu0 0.0
        %1071 = vmatpush1.msra.mxu0 0.0
        %1072 = vmatprep.subr.mxu0 0.0
        %1073 = vmatpush1.msra.mxu0 0.0
        %1074 = vmatprep.subr.mxu0 0.0
        %1075 = vmatpush1.msra.mxu0 0.0
        %1076 = vmatprep.subr.mxu0 0.0
        %1077 = vmatpush1.msra.mxu0 0.0
        %1078 = vmatprep.subr.mxu0 0.0
        %1079 = vmatpush1.msra.mxu0 0.0
        %1080 = vmatprep.subr.mxu0 0.0
        %1081 = vmatpush1.msra.mxu0 0.0
        %1082 = vmatprep.subr.mxu0 0.0
        %1083 = vmatpush1.msra.mxu0 0.0
        %1084 = vmatprep.subr.mxu0 0.0
        %1085 = vmatpush1.msra.mxu0 0.0
        %1086 = vmatprep.subr.mxu0 0.0
        %1087 = vmatpush1.msra.mxu0 0.0
        %1088 = vmatprep.subr.mxu0 0.0
        %1089 = vmatpush1.msra.mxu0 0.0
        %1090 = vmatprep.subr.mxu0 0.0
        %1091 = vmatpush1.msra.mxu0 0.0
        %1092 = vmatprep.subr.mxu0 0.0
        %1093 = vmatpush1.msra.mxu0 0.0
        %1094 = vmatprep.subr.mxu0 0.0
        %1095 = vmatpush1.msra.mxu0 0.0
        %1096 = vmatprep.subr.mxu0 0.0
        %1097 = vmatpush1.msra.mxu0 0.0
        %1098 = vmatprep.subr.mxu0 0.0
        %1099 = vmatpush1.msra.mxu0 0.0
        %1100 = vmatprep.subr.mxu0 0.0
        %1101 = vmatpush1.msra.mxu0 0.0
        %1102 = vmatprep.subr.mxu0 0.0
        %1103 = vmatpush1.msra.mxu0 0.0
        %1104 = vmatprep.subr.mxu0 0.0
        %1105 = vmatpush1.msra.mxu0 0.0
        %1106 = vmatprep.mubr.f32.mxu0 0.0
        %1107 = vmatmul.mubr.f32.gmra.mrb[0].mxu0 %v1037
        %v1108 = vpop.f32.mrb[0].mxu0
        %v1109 = vadd.f32 %v1029, %v1108
        %v1110 = vpop.f32.mrb[0].mxu0
        %1111 = vmatprep.mubr.f32.mxu0 0.0
        %1112 = vmatmul.mubr.f32.gmra.mrb[0].mxu0 %v1040
        %v1113 = vpop.f32.mrb[0].mxu0
        %v1114 = vadd.f32 %v1034, %v1113
        %v1115 = vpop.f32.mrb[0].mxu0
        %1116 = vdwg.mxu0
        %v1117 = vpack.c.bf16 %v644, %v639
        %v1118 = vpack.c.bf16 %v654, %v649
        %v1119 = vpack.c.bf16 %v664, %v659
        %v1120 = vpack.c.bf16 %v674, %v669
        %v1121 = vpack.c.bf16 %v684, %v679
        %v1122 = vpack.c.bf16 %v694, %v689
        %v1123 = vpack.c.bf16 %v704, %v699
        %v1124 = vpack.c.bf16 %v714, %v709
        %v1133 = vunpack.c.l.b16 %v1117
        %v1134 = vunpack.c.h.b16 %v1117
        %v1135 = vunpack.c.l.b16 %v1118
        %v1136 = vunpack.c.h.b16 %v1118
        %v1137 = vunpack.c.l.b16 %v1119
        %v1138 = vunpack.c.h.b16 %v1119
        %v1139 = vunpack.c.l.b16 %v1120
        %v1140 = vunpack.c.h.b16 %v1120
        %v1141 = vunpack.c.l.b16 %v1121
        %v1142 = vunpack.c.h.b16 %v1121
        %v1143 = vunpack.c.l.b16 %v1122
        %v1144 = vunpack.c.h.b16 %v1122
        %v1145 = vunpack.c.l.b16 %v1123
        %v1146 = vunpack.c.h.b16 %v1123
        %v1147 = vunpack.c.l.b16 %v1124
        %v1148 = vunpack.c.h.b16 %v1124
        %v1149 = vpack.c.b16 %v1133, %v1133
        %v1150 = vpack.c.b16 %v1134, %v1134
        %v1151 = vpack.c.b16 %v1135, %v1135
        %v1152 = vpack.c.b16 %v1136, %v1136
        %v1153 = vpack.c.b16 %v1137, %v1137
        %v1154 = vpack.c.b16 %v1138, %v1138
        %v1155 = vpack.c.b16 %v1139, %v1139
        %v1156 = vpack.c.b16 %v1140, %v1140
        %v1157 = vpack.c.b16 %v1141, %v1141
        %v1158 = vpack.c.b16 %v1142, %v1142
        %v1159 = vpack.c.b16 %v1143, %v1143
        %v1160 = vpack.c.b16 %v1144, %v1144
        %v1161 = vpack.c.b16 %v1145, %v1145
        %v1162 = vpack.c.b16 %v1146, %v1146
        %v1163 = vpack.c.b16 %v1147, %v1147
        %v1164 = vpack.c.b16 %v1148, %v1148
        %1181 = vst [vmem:[%s394] sm:$0xf] %v1149
        %1182 = vst [vmem:[%s394 + $0x4] sm:$0xf] %v1150
        %1183 = vst [vmem:[%s394 + $0x8] sm:$0xf] %v1151
        %1184 = vst [vmem:[%s394 + $0xc] sm:$0xf] %v1152
        %1185 = vst [vmem:[%s394 + $0x10] sm:$0xf] %v1153
        %1186 = vst [vmem:[%s394 + $0x14] sm:$0xf] %v1154
        %1187 = vst [vmem:[%s394 + $0x18] sm:$0xf] %v1155
        %1188 = vst [vmem:[%s394 + $0x1c] sm:$0xf] %v1156
        %1189 = vst [vmem:[%s394 + $0x20] sm:$0xf] %v1157
        %1190 = vst [vmem:[%s394 + $0x24] sm:$0xf] %v1158
        %1191 = vst [vmem:[%s394 + $0x28] sm:$0xf] %v1159
        %1192 = vst [vmem:[%s394 + $0x2c] sm:$0xf] %v1160
        %1193 = vst [vmem:[%s394 + $0x30] sm:$0xf] %v1161
        %1194 = vst [vmem:[%s394 + $0x34] sm:$0xf] %v1162
        %1195 = vst [vmem:[%s394 + $0x38] sm:$0xf] %v1163
        %1196 = vst [vmem:[%s394 + $0x3c] sm:$0xf] %v1164
        %v1197 = vpack.c.bf16 %v949, %v944
        %v1198 = vpack.c.bf16 %v959, %v954
        %v1199 = vpack.c.bf16 %v969, %v964
        %v1200 = vpack.c.bf16 %v979, %v974
        %v1201 = vpack.c.bf16 %v989, %v984
        %v1202 = vpack.c.bf16 %v999, %v994
        %v1203 = vpack.c.bf16 %v1009, %v1004
        %v1204 = vpack.c.bf16 %v1019, %v1014
        %v1213 = vunpack.c.l.b16 %v1197
        %v1214 = vunpack.c.h.b16 %v1197
        %v1215 = vunpack.c.l.b16 %v1198
        %v1216 = vunpack.c.h.b16 %v1198
        %v1217 = vunpack.c.l.b16 %v1199
        %v1218 = vunpack.c.h.b16 %v1199
        %v1219 = vunpack.c.l.b16 %v1200
        %v1220 = vunpack.c.h.b16 %v1200
        %v1221 = vunpack.c.l.b16 %v1201
        %v1222 = vunpack.c.h.b16 %v1201
        %v1223 = vunpack.c.l.b16 %v1202
        %v1224 = vunpack.c.h.b16 %v1202
        %v1225 = vunpack.c.l.b16 %v1203
        %v1226 = vunpack.c.h.b16 %v1203
        %v1227 = vunpack.c.l.b16 %v1204
        %v1228 = vunpack.c.h.b16 %v1204
        %v1229 = vpack.c.b16 %v1213, %v1213
        %v1230 = vpack.c.b16 %v1214, %v1214
        %v1231 = vpack.c.b16 %v1215, %v1215
        %v1232 = vpack.c.b16 %v1216, %v1216
        %v1233 = vpack.c.b16 %v1217, %v1217
        %v1234 = vpack.c.b16 %v1218, %v1218
        %v1235 = vpack.c.b16 %v1219, %v1219
        %v1236 = vpack.c.b16 %v1220, %v1220
        %v1237 = vpack.c.b16 %v1221, %v1221
        %v1238 = vpack.c.b16 %v1222, %v1222
        %v1239 = vpack.c.b16 %v1223, %v1223
        %v1240 = vpack.c.b16 %v1224, %v1224
        %v1241 = vpack.c.b16 %v1225, %v1225
        %v1242 = vpack.c.b16 %v1226, %v1226
        %v1243 = vpack.c.b16 %v1227, %v1227
        %v1244 = vpack.c.b16 %v1228, %v1228
        %1261 = vst [vmem:[%s401] sm:$0xf] %v1229
        %1262 = vst [vmem:[%s401 + $0x4] sm:$0xf] %v1230
        %1263 = vst [vmem:[%s401 + $0x8] sm:$0xf] %v1231
        %1264 = vst [vmem:[%s401 + $0xc] sm:$0xf] %v1232
        %1265 = vst [vmem:[%s401 + $0x10] sm:$0xf] %v1233
        %1266 = vst [vmem:[%s401 + $0x14] sm:$0xf] %v1234
        %1267 = vst [vmem:[%s401 + $0x18] sm:$0xf] %v1235
        %1268 = vst [vmem:[%s401 + $0x1c] sm:$0xf] %v1236
        %1269 = vst [vmem:[%s401 + $0x20] sm:$0xf] %v1237
        %1270 = vst [vmem:[%s401 + $0x24] sm:$0xf] %v1238
        %1271 = vst [vmem:[%s401 + $0x28] sm:$0xf] %v1239
        %1272 = vst [vmem:[%s401 + $0x2c] sm:$0xf] %v1240
        %1273 = vst [vmem:[%s401 + $0x30] sm:$0xf] %v1241
        %1274 = vst [vmem:[%s401 + $0x34] sm:$0xf] %v1242
        %1275 = vst [vmem:[%s401 + $0x38] sm:$0xf] %v1243
        %1276 = vst [vmem:[%s401 + $0x3c] sm:$0xf] %v1244
        %v1277 = vpack.c.bf16 %v1114, %v1109
        %v1279 = vunpack.c.l.b16 %v1277
        %v1280 = vunpack.c.h.b16 %v1277
        %v1281 = vpack.c.b16 %v1279, %v1279
        %v1282 = vpack.c.b16 %v1280, %v1280
        %1285 = vst [vmem:[%s408] sm:$0xf] %v1281
        %1286 = vst [vmem:[%s408 + $0x4] sm:$0xf] %v1282
        %s1287 = sand.u32 %s203, 1
        %s1288 = scalar_lea.sflag [#allocation4], %s1287
        %s1289 = sand.u32 %s203, 1
        %s1290 = smul.addr %s1289, 64
        %s1291 = scalar_lea.vmem [#allocation3], %s1290
        %s1292 = sand.u32 %s27, 1
        %s1293 = scalar_lea.sflag [#allocation6], %s1292
        %s1294 = sand.u32 %s231, 1
        %s1295 = smul.addr %s1294, 64
        %s1296 = scalar_lea.vmem [#allocation5], %s1295
        %s1297 = sand.u32 %s27, 1
        %s1298 = scalar_lea.sflag [#allocation6], %s1297
        %s1299 = sand.u32 %s259, 1
        %s1300 = smul.addr %s1299, 8
        %s1301 = scalar_lea.vmem [#allocation7], %s1300
        // Predicated region
        $region87: #{tpu_custom_call.1} parent=81 // pred_check
          %p1302 = pneg %p213
        $region88: #{tpu_custom_call.1} parent=81 // pred_check_branch
          %1304 = sbr.rel (%p1302) target = $region90
        $region89: #{tpu_custom_call.1} parent=81 // pred_region
          %s1306 = ssub.s32 1024, 1024
          %1307 = vsyncadd %s1288, %s1306
          %s1308 = smul.addr %s31, 32
          %s1309 = sadd.s32 %s32, %s1308
          %s1310 = smul.addr %s1309, 64
          %s1311 = scalar_lea.hbm %s7, %s1310
          %s1312 = sshll.u32 %s1291, 4
          %s1313 = int_to_ptr.vmem [resolvable:$true] %s1312
          %1318 = dma.vmem_to_hbm [thread:$0]  %s1313, 1024, %s1311, %s1288, 64, 128, 4
        $region90: #{tpu_custom_call.1} parent=81 // pred_fallthru
          _
        // Predicated region
        $region91: #{tpu_custom_call.1} parent=81 // pred_check
          %p1319 = pneg %p241
        $region92: #{tpu_custom_call.1} parent=81 // pred_check_branch
          %1321 = sbr.rel (%p1319) target = $region94
        $region93: #{tpu_custom_call.1} parent=81 // pred_region
          %s1323 = ssub.s32 1024, 1024
          %1324 = vsyncadd %s1293, %s1323
          %s1325 = smul.addr %s31, 32
          %s1326 = sadd.s32 %s32, %s1325
          %s1327 = smul.addr %s1326, 64
          %s1328 = scalar_lea.hbm %s8, %s1327
          %s1329 = sshll.u32 %s1296, 4
          %s1330 = int_to_ptr.vmem [resolvable:$true] %s1329
          %1335 = dma.vmem_to_hbm [thread:$0]  %s1330, 1024, %s1328, %s1293, 64, 128, 4
        $region94: #{tpu_custom_call.1} parent=81 // pred_fallthru
          _
        // Predicated region
        $region95: #{tpu_custom_call.1} parent=81 // pred_check
          %p1336 = pneg %p269
        $region96: #{tpu_custom_call.1} parent=81 // pred_check_branch
          %1338 = sbr.rel (%p1336) target = $region98
        $region97: #{tpu_custom_call.1} parent=81 // pred_region
          %s1340 = ssub.s32 128, 128
          %1341 = vsyncadd %s1298, %s1340
          %s1342 = smul.addr %s31, 4
          %s1343 = sadd.s32 %s32, %s1342
          %s1344 = smul.addr %s1343, 64
          %s1345 = scalar_lea.hbm %s9, %s1344
          %s1346 = sshll.u32 %s1301, 4
          %s1347 = int_to_ptr.vmem [resolvable:$true] %s1346
          %1352 = dma.vmem_to_hbm [thread:$0]  %s1347, 128, %s1345, %s1298, 64, 128, 4
        $region98: #{tpu_custom_call.1} parent=81 // pred_fallthru
          _
      $region82: #{tpu_custom_call.1} parent=5 // pred_fallthru
        _
      %p1353 = scmp.le.s32.totalorder 2, %s22
      // Predicated region
      $region99: #{tpu_custom_call.1} parent=5 // pred_check
        %p1354 = pneg %p1353
      $region100: #{tpu_custom_call.1} parent=5 // pred_check_branch
        %1356 = sbr.rel (%p1354) target = $region102
      $region101: #{tpu_custom_call.1} parent=5 // pred_region
        %s1357 = ssub.s32 %s22, 2
        // Predicated region
        $region103: #{tpu_custom_call.1} parent=101 // pred_check
          %p1358 = pneg %p219
        $region104: #{tpu_custom_call.1} parent=101 // pred_check_branch
          %1360 = sbr.rel (%p1358) target = $region106
        $region105: #{tpu_custom_call.1} parent=101 // pred_region
          %s1361 = sand.u32 %s204, 1
          %s1362 = scalar_lea.sflag [#allocation4], %s1361
          %s1363 = sand.u32 %s204, 1
          %s1364 = smul.addr %s1363, 64
          %s1365 = scalar_lea.vmem [#allocation3], %s1364
          %1366 = dma.done %s1362, 1024
        $region106: #{tpu_custom_call.1} parent=101 // pred_fallthru
          _
        // Predicated region
        $region107: #{tpu_custom_call.1} parent=101 // pred_check
          %p1367 = pneg %p247
        $region108: #{tpu_custom_call.1} parent=101 // pred_check_branch
          %1369 = sbr.rel (%p1367) target = $region110
        $region109: #{tpu_custom_call.1} parent=101 // pred_region
          %s1370 = sand.u32 %s28, 1
          %s1371 = scalar_lea.sflag [#allocation6], %s1370
          %s1372 = sand.u32 %s232, 1
          %s1373 = smul.addr %s1372, 64
          %s1374 = scalar_lea.vmem [#allocation5], %s1373
          %1375 = dma.done %s1371, 1024
        $region110: #{tpu_custom_call.1} parent=101 // pred_fallthru
          _
        // Predicated region
        $region111: #{tpu_custom_call.1} parent=101 // pred_check
          %p1376 = pneg %p275
        $region112: #{tpu_custom_call.1} parent=101 // pred_check_branch
          %1378 = sbr.rel (%p1376) target = $region114
        $region113: #{tpu_custom_call.1} parent=101 // pred_region
          %s1379 = sand.u32 %s28, 1
          %s1380 = scalar_lea.sflag [#allocation6], %s1379
          %s1381 = sand.u32 %s260, 1
          %s1382 = smul.addr %s1381, 8
          %s1383 = scalar_lea.vmem [#allocation7], %s1382
          %1384 = dma.done %s1380, 128
        $region114: #{tpu_custom_call.1} parent=101 // pred_fallthru
          _
      $region102: #{tpu_custom_call.1} parent=5 // pred_fallthru
        _
    $region6: #{tpu_custom_call.1} parent=1 // loop_footer
      %s26 = sadd.s32 1, %s22
    $region7: #{tpu_custom_call.1} parent=1 // loop_footer_branch
      %21 = sbr.rel target = $region3
    $region8: #{tpu_custom_call.1} parent=1 // loop_exit
      _
    %1385 = vsyncpa [#allocation4], 1
    %s1386 = scalar_lea.sflag [#allocation4], 1
    %1387 = vsyncpa %s1386, 1
    %1388 = vsyncpa [#allocation6], 1
    %s1389 = scalar_lea.sflag [#allocation6], 1
    %1390 = vsyncpa %s1389, 1

</llo_original>
